<compile_context>
chip_gen: v6e
topology: v6e:2x2x1
jax: 0.10.0
libtpu: 0.0.40
codegen_flags: <defaults>
</compile_context>

<pallas_src>
import functools
import math

import jax
import jax.numpy as jnp
from jax import lax
from jax.experimental import pallas as pl
from jax.experimental.pallas import tpu as pltpu


def _mha_kernel(*refs, n_head, d_k, d_v, block_b, len_q, len_k, scale, eps,
                apply_ln, use_residual, self_attn):
    if self_attn:
        (q_ref, wq_ref, wk_ref, wv_ref, wp_ref, bp_ref, a2_ref, b2_ref,
         o_ref) = refs
    else:
        (q_ref, k_ref, v_ref, wq_ref, wk_ref, wv_ref, wp_ref, bp_ref, a2_ref,
         b2_ref, o_ref) = refs

    d_model = q_ref.shape[-1]
    d_out = bp_ref.shape[-1]
    m_rows = block_b * len_q

    # Fold the batch block into the matmul M dimension: one big slab for the
    # projections, output projection, bias/residual/LN, and a single store.
    q2 = q_ref[...].reshape(m_rows, d_model)
    cdt = q2.dtype                                   # MXU operands stay in input dtype
    if self_attn:
        k2 = q2                                      # reuse the streamed q block
        v2 = q2
    else:
        k2 = k_ref[...].reshape(block_b * len_k, d_model)
        v2 = v_ref[...].reshape(block_b * len_k, d_model)

    # Stacked QKV projections: ONE matmul each against (d_model, H*d_k|H*d_v).
    # The 1/sqrt(d_model) temper is folded into Q (fewer elements than scores).
    qall = (jnp.dot(q2, wq_ref[...], preferred_element_type=jnp.float32)
            * scale).astype(cdt)                                   # (M,  H*d_k)
    kall = jnp.dot(k2, wk_ref[...],
                   preferred_element_type=jnp.float32).astype(cdt)  # (Mk, H*d_k)
    vall = jnp.dot(v2, wv_ref[...],
                   preferred_element_type=jnp.float32).astype(cdt)  # (Mk, H*d_v)

    # Score / softmax / AV per (batch row, head); heads are free static lane
    # slices of the stacked projections.
    batch_rows = []
    for bb in range(block_b):
        qb = qall[bb * len_q:(bb + 1) * len_q, :]
        kb = kall[bb * len_k:(bb + 1) * len_k, :]
        vb = vall[bb * len_k:(bb + 1) * len_k, :]
        head_outs = []
        for h in range(n_head):
            qh = qb[:, h * d_k:(h + 1) * d_k]
            kh = kb[:, h * d_k:(h + 1) * d_k]
            vh = vb[:, h * d_v:(h + 1) * d_v]
            s = lax.dot_general(
                qh, kh, dimension_numbers=(((1,), (1,)), ((), ())),
                preferred_element_type=jnp.float32)                # (len_q, len_k)
            s = s - jnp.max(s, axis=-1, keepdims=True)
            p = jnp.exp(s)
            # EUP reciprocal (approx) instead of a VPU divide / Newton refine.
            p = p * pl.reciprocal(jnp.sum(p, axis=-1, keepdims=True),
                                  approx=True)
            head_outs.append(jnp.dot(p.astype(cdt), vh,
                                     preferred_element_type=jnp.float32))
        batch_rows.append(jnp.concatenate(head_outs, axis=-1))      # (len_q, H*d_v)
    oconcat = (jnp.concatenate(batch_rows, axis=0)
               if block_b > 1 else batch_rows[0])                   # (M, H*d_v)

    # Single output projection over the full head concat; bias / residual / LN
    # are applied once to the whole (M, d_out) slab (broadcasts not re-emitted).
    y = jnp.dot(oconcat.astype(cdt), wp_ref[...],
                preferred_element_type=jnp.float32)                 # (M, d_out)
    y = y + bp_ref[...].astype(jnp.float32)
    if use_residual:
        y = y + q2.astype(jnp.float32)

    if apply_ln:
        mu = jnp.mean(y, axis=-1, keepdims=True)
        diff = y - mu
        # torch.std is the UNBIASED estimator: /(d_out - 1); eps added to sigma.
        var = jnp.sum(diff * diff, axis=-1, keepdims=True) / (d_out - 1)
        inv = pl.reciprocal(jnp.sqrt(var) + eps, approx=False)
        y = (diff * inv * a2_ref[...].astype(jnp.float32)
             + b2_ref[...].astype(jnp.float32))

    o_ref[...] = y.reshape(block_b, len_q, d_out).astype(o_ref.dtype)


def multi_head_attention(q, k=None, v=None, *, w_qs, w_ks, w_vs, w_proj,
                         b_proj, a_2, b_2, eps=1e-3, use_residual=True,
                         block_b=1):
    """q, k, v: (B, len, d_model).  Weights follow the PyTorch module layouts:
       w_qs/w_ks: (n_head, d_model, d_k), w_vs: (n_head, d_model, d_v),
       w_proj: (d_out, n_head*d_v) [nn.Linear.weight], b_proj/a_2/b_2: (d_out,)."""
    self_attn = (k is None or k is q) and (v is None or v is q)
    k = q if k is None else k
    v = q if v is None else v

    B, len_q, d_model = q.shape
    _, len_k, _ = k.shape
    assert v.shape[1] == len_k, "k and v must share their sequence length"
    n_head, _, d_k = w_qs.shape
    d_v = w_vs.shape[-1]
    d_out, hv = w_proj.shape
    assert hv == n_head * d_v
    if use_residual:
        assert d_model == d_out, "residual requires d_model == d_out"
    if B % block_b != 0:
        raise ValueError("block_b must divide the batch size")

    # Layout plumbing only: stack heads along the matmul N dimension so the
    # kernel does ONE projection matmul per Q/K/V and ONE output projection.
    wq_all = jnp.transpose(w_qs, (1, 0, 2)).reshape(d_model, n_head * d_k)
    wk_all = jnp.transpose(w_ks, (1, 0, 2)).reshape(d_model, n_head * d_k)
    wv_all = jnp.transpose(w_vs, (1, 0, 2)).reshape(d_model, n_head * d_v)
    wp = jnp.transpose(w_proj)                      # (n_head*d_v, d_out)
    bpr = b_proj.reshape(1, d_out)
    a2r = a_2.reshape(1, d_out)
    b2r = b_2.reshape(1, d_out)

    # v7x has only 64 MiB VMEM/TC: if f32 resident weights would crowd it out,
    # keep them resident in bf16 instead (halves footprint; MXU-native dtype).
    weight_bytes = sum(int(a.size) * jnp.dtype(a.dtype).itemsize
                       for a in (wq_all, wk_all, wv_all, wp))
    if weight_bytes > (24 << 20):
        wq_all, wk_all, wv_all, wp = (a.astype(jnp.bfloat16)
                                      for a in (wq_all, wk_all, wv_all, wp))
        weight_bytes = sum(int(a.size) * jnp.dtype(a.dtype).itemsize
                           for a in (wq_all, wk_all, wv_all, wp))
    weight_bytes += sum(int(a.size) * jnp.dtype(a.dtype).itemsize
                        for a in (bpr, a2r, b2r))

    apply_ln = (len_q != 1)        # LayerNormalization early-returns on z.size(1)==1
    scale = 1.0 / math.sqrt(d_model)

    kernel = functools.partial(
        _mha_kernel, n_head=n_head, d_k=d_k, d_v=d_v, block_b=block_b,
        len_q=len_q, len_k=len_k, scale=scale, eps=eps, apply_ln=apply_ln,
        use_residual=use_residual, self_attn=self_attn)

    grid = (B // block_b,)
    itemsize = jnp.dtype(q.dtype).itemsize
    act_rows = len_q + (0 if self_attn else 2 * len_k)
    stream_bytes = block_b * (act_rows * d_model + len_q * d_out) * itemsize
    # Single-copy weights + double-buffered streaming blocks + headroom,
    # capped at 64 MiB so the same budget also fits v7x's smaller VMEM.
    vmem_limit = int(min(64 << 20,
                         max(32 << 20,
                             weight_bytes + 4 * stream_bytes + (4 << 20))))

    flops = B * (2 * len_q * d_model * (n_head * d_k)
                 + 2 * len_k * d_model * (n_head * d_k)
                 + 2 * len_k * d_model * (n_head * d_v)
                 + n_head * (2 * len_q * len_k * d_k + 2 * len_q * len_k * d_v)
                 + 2 * len_q * (n_head * d_v) * d_out)
    transcendentals = B * (n_head * len_q * len_k + n_head * len_q + 2 * len_q)
    act_bytes = int(q.size) * itemsize
    if not self_attn:
        act_bytes += int(k.size + v.size) * itemsize
    bytes_accessed = act_bytes + weight_bytes + B * len_q * d_out * itemsize

    vmem = pltpu.MemorySpace.VMEM
    in_specs = [pl.BlockSpec((block_b, len_q, d_model), lambda b: (b, 0, 0))]
    inputs = [q]
    if not self_attn:
        in_specs += [pl.BlockSpec((block_b, len_k, d_model), lambda b: (b, 0, 0)),
                     pl.BlockSpec((block_b, len_k, d_model), lambda b: (b, 0, 0))]
        inputs += [k, v]
    # Loop-invariant operands: whole-array VMEM residents (fetched once,
    # no per-step DMA, no double-buffering of weights).
    in_specs += [pl.BlockSpec(memory_space=vmem)] * 7
    inputs += [wq_all, wk_all, wv_all, wp, bpr, a2r, b2r]

    out = pl.pallas_call(
        kernel,
        out_shape=jax.ShapeDtypeStruct((B, len_q, d_out), q.dtype),
        grid=grid,
        in_specs=in_specs,
        out_specs=pl.BlockSpec((block_b, len_q, d_out), lambda b: (b, 0, 0)),
        compiler_params=pltpu.CompilerParams(
            dimension_semantics=("parallel",),
            vmem_limit_bytes=vmem_limit),
        cost_estimate=pl.CostEstimate(
            flops=int(flops), transcendentals=int(transcendentals),
            bytes_accessed=int(bytes_accessed)),
    )(*inputs)

    return out


if __name__ == "__main__":
    # Small shapes consistent with the module: batch=2, seq=8, d_model=32, 4 heads.
    B, L, D_MODEL, N_HEAD = 2, 8, 32, 4
    D_K = D_V = D_MODEL            # module defaults: d_k = d_v = d_out = d_model
    D_OUT = D_MODEL
    EPS = 1e-3

    key = jax.random.PRNGKey(0)
    kq, kwq, kwk, kwv, kwp, kbp = jax.random.split(key, 6)

    q = jax.random.normal(kq, (B, L, D_MODEL), dtype=jnp.float32)
    w_qs = 0.1 * jax.random.normal(kwq, (N_HEAD, D_MODEL, D_K), dtype=jnp.float32)
    w_ks = 0.1 * jax.random.normal(kwk, (N_HEAD, D_MODEL, D_K), dtype=jnp.float32)
    w_vs = 0.1 * jax.random.normal(kwv, (N_HEAD, D_MODEL, D_V), dtype=jnp.float32)
    w_proj = 0.1 * jax.random.normal(kwp, (D_OUT, N_HEAD * D_V), dtype=jnp.float32)
    b_proj = 0.1 * jax.random.normal(kbp, (D_OUT,), dtype=jnp.float32)
    a_2 = jnp.ones((D_OUT,), dtype=jnp.float32)    # LayerNormalization.a_2
    b_2 = jnp.zeros((D_OUT,), dtype=jnp.float32)   # LayerNormalization.b_2

    out = multi_head_attention(q, w_qs=w_qs, w_ks=w_ks, w_vs=w_vs,
                               w_proj=w_proj, b_proj=b_proj, a_2=a_2, b_2=b_2,
                               eps=EPS, use_residual=True, block_b=1)
    jax.block_until_ready(out)

    # ---- pure-JAX reference (mirrors the PyTorch forward) --------------------
    qh = jnp.einsum("bld,hdk->hblk", q, w_qs)
    kh = jnp.einsum("bld,hdk->hblk", q, w_ks)
    vh = jnp.einsum("bld,hdk->hblk", q, w_vs)
    attn = jnp.einsum("hblk,hbmk->hblm", qh, kh) / jnp.sqrt(jnp.float32(D_MODEL))
    attn = attn - jnp.max(attn, axis=-1, keepdims=True)
    attn = jnp.exp(attn)
    attn = attn / jnp.sum(attn, axis=-1, keepdims=True)
    oh = jnp.einsum("hblm,hbmv->hblv", attn, vh)             # (H, B, L, d_v)
    concat = jnp.concatenate([oh[h] for h in range(N_HEAD)], axis=-1)
    proj = concat @ w_proj.T + b_proj
    res = proj + q
    mu = jnp.mean(res, axis=-1, keepdims=True)
    sigma = jnp.sqrt(jnp.sum((res - mu) ** 2, axis=-1, keepdims=True) / (D_OUT - 1))
    ref = (res - mu) / (sigma + EPS) * a_2 + b_2

    # Tolerance absorbs MXU precision / op-ordering differences and the approx
    # (EUP) reciprocal in the softmax denominator (~2e-4 relative); real formula
    # bugs produce O(0.1..1) errors and still trip this check.
    assert jnp.allclose(out, ref, atol=1e-3, rtol=1e-3), "mismatch vs reference"
    print("KERNEL_OK")
</pallas_src>

<mosaic_0001>
module attributes {stable_mosaic.version = 11 : i64} {
  func.func @_mha_kernel(%arg0: i32, %arg1: memref<1x8x32xf32, #tpu.memory_space<vmem>>, %arg2: memref<32x128xf32, #tpu.memory_space<vmem>>, %arg3: memref<32x128xf32, #tpu.memory_space<vmem>>, %arg4: memref<32x128xf32, #tpu.memory_space<vmem>>, %arg5: memref<128x32xf32, #tpu.memory_space<vmem>>, %arg6: memref<1x32xf32, #tpu.memory_space<vmem>>, %arg7: memref<1x32xf32, #tpu.memory_space<vmem>>, %arg8: memref<1x32xf32, #tpu.memory_space<vmem>>, %arg9: memref<1x8x32xf32, #tpu.memory_space<vmem>>) attributes {dimension_semantics = [#tpu.dimension_semantics<parallel>], iteration_bounds = array<i64: 2>, scalar_prefetch = 0 : i64, scratch_operands = 0 : i64, tpu.core_type = #tpu.core_type<tc>, window_params = [{transform_indices = @transform_0, window_bounds = array<i64: 1, 8, 32>}, {pipeline_mode = #tpu.pipeline_mode<synchronous>, transform_indices = @transform_1, window_bounds = array<i64: 32, 128>}, {pipeline_mode = #tpu.pipeline_mode<synchronous>, transform_indices = @transform_2, window_bounds = array<i64: 32, 128>}, {pipeline_mode = #tpu.pipeline_mode<synchronous>, transform_indices = @transform_3, window_bounds = array<i64: 32, 128>}, {pipeline_mode = #tpu.pipeline_mode<synchronous>, transform_indices = @transform_4, window_bounds = array<i64: 128, 32>}, {pipeline_mode = #tpu.pipeline_mode<synchronous>, transform_indices = @transform_5, window_bounds = array<i64: 1, 32>}, {pipeline_mode = #tpu.pipeline_mode<synchronous>, transform_indices = @transform_6, window_bounds = array<i64: 1, 32>}, {pipeline_mode = #tpu.pipeline_mode<synchronous>, transform_indices = @transform_7, window_bounds = array<i64: 1, 32>}, {transform_indices = @transform_8, window_bounds = array<i64: 1, 8, 32>}]} {
    %c0 = arith.constant 0 : index
    %c0_0 = arith.constant 0 : index
    %c0_1 = arith.constant 0 : index
    %0 = vector.load %arg1[%c0, %c0_0, %c0_1] : memref<1x8x32xf32, #tpu.memory_space<vmem>>, vector<1x8x32xf32>
    %1 = vector.shape_cast %0 : vector<1x8x32xf32> to vector<8x32xf32>
    %c0_2 = arith.constant 0 : index
    %c0_3 = arith.constant 0 : index
    %2 = vector.load %arg2[%c0_2, %c0_3] : memref<32x128xf32, #tpu.memory_space<vmem>>, vector<32x128xf32>
    %cst = arith.constant dense<0.000000e+00> : vector<8x128xf32>
    %3 = tpu.matmul %1, %2, %cst {dimension_numbers = #tpu.dot_dimension_numbers<[1], [0], [0], [1], [0, 0, 1, 1], [], []>} : vector<8x32xf32>, vector<32x128xf32>, vector<8x128xf32> -> vector<8x128xf32>
    %cst_4 = arith.constant 0.176776692 : f32
    %4 = vector.broadcast %cst_4 : f32 to vector<8x128xf32>
    %5 = arith.mulf %3, %4 : vector<8x128xf32>
    %c0_5 = arith.constant 0 : index
    %c0_6 = arith.constant 0 : index
    %6 = vector.load %arg3[%c0_5, %c0_6] : memref<32x128xf32, #tpu.memory_space<vmem>>, vector<32x128xf32>
    %cst_7 = arith.constant dense<0.000000e+00> : vector<8x128xf32>
    %7 = tpu.matmul %1, %6, %cst_7 {dimension_numbers = #tpu.dot_dimension_numbers<[1], [0], [0], [1], [0, 0, 1, 1], [], []>} : vector<8x32xf32>, vector<32x128xf32>, vector<8x128xf32> -> vector<8x128xf32>
    %c0_8 = arith.constant 0 : index
    %c0_9 = arith.constant 0 : index
    %8 = vector.load %arg4[%c0_8, %c0_9] : memref<32x128xf32, #tpu.memory_space<vmem>>, vector<32x128xf32>
    %cst_10 = arith.constant dense<0.000000e+00> : vector<8x128xf32>
    %9 = tpu.matmul %1, %8, %cst_10 {dimension_numbers = #tpu.dot_dimension_numbers<[1], [0], [0], [1], [0, 0, 1, 1], [], []>} : vector<8x32xf32>, vector<32x128xf32>, vector<8x128xf32> -> vector<8x128xf32>
    %10 = vector.extract_strided_slice %5 {offsets = [0, 0], sizes = [8, 32], strides = [1, 1]} : vector<8x128xf32> to vector<8x32xf32>
    %11 = vector.extract_strided_slice %7 {offsets = [0, 0], sizes = [8, 32], strides = [1, 1]} : vector<8x128xf32> to vector<8x32xf32>
    %12 = vector.extract_strided_slice %9 {offsets = [0, 0], sizes = [8, 32], strides = [1, 1]} : vector<8x128xf32> to vector<8x32xf32>
    %cst_11 = arith.constant dense<0.000000e+00> : vector<8x8xf32>
    %13 = tpu.matmul %10, %11, %cst_11 {dimension_numbers = #tpu.dot_dimension_numbers<[1], [1], [0], [0], [0, 0, 1, 0], [], []>} : vector<8x32xf32>, vector<8x32xf32>, vector<8x8xf32> -> vector<8x8xf32>
    %cst_12 = arith.constant dense<0xFF800000> : vector<8xf32>
    %14 = vector.multi_reduction <maximumf>, %13, %cst_12 [1] : vector<8x8xf32> to vector<8xf32>
    %15 = vector.shape_cast %14 : vector<8xf32> to vector<8x1xf32>
    %16 = vector.broadcast %15 : vector<8x1xf32> to vector<8x8xf32>
    %17 = arith.subf %13, %16 : vector<8x8xf32>
    %18 = math.exp %17 : vector<8x8xf32>
    %cst_13 = arith.constant dense<0.000000e+00> : vector<8xf32>
    %19 = vector.multi_reduction <add>, %18, %cst_13 [1] : vector<8x8xf32> to vector<8xf32>
    %20 = vector.shape_cast %19 : vector<8xf32> to vector<8x1xf32>
    %21 = tpu.reciprocal %20 {approx = true} : vector<8x1xf32> -> vector<8x1xf32>
    %22 = vector.broadcast %21 : vector<8x1xf32> to vector<8x8xf32>
    %23 = arith.mulf %18, %22 : vector<8x8xf32>
    %cst_14 = arith.constant dense<0.000000e+00> : vector<8x32xf32>
    %24 = tpu.matmul %23, %12, %cst_14 {dimension_numbers = #tpu.dot_dimension_numbers<[1], [0], [0], [1], [0, 0, 1, 1], [], []>} : vector<8x8xf32>, vector<8x32xf32>, vector<8x32xf32> -> vector<8x32xf32>
    %25 = vector.extract_strided_slice %5 {offsets = [0, 32], sizes = [8, 32], strides = [1, 1]} : vector<8x128xf32> to vector<8x32xf32>
    %26 = vector.extract_strided_slice %7 {offsets = [0, 32], sizes = [8, 32], strides = [1, 1]} : vector<8x128xf32> to vector<8x32xf32>
    %27 = vector.extract_strided_slice %9 {offsets = [0, 32], sizes = [8, 32], strides = [1, 1]} : vector<8x128xf32> to vector<8x32xf32>
    %cst_15 = arith.constant dense<0.000000e+00> : vector<8x8xf32>
    %28 = tpu.matmul %25, %26, %cst_15 {dimension_numbers = #tpu.dot_dimension_numbers<[1], [1], [0], [0], [0, 0, 1, 0], [], []>} : vector<8x32xf32>, vector<8x32xf32>, vector<8x8xf32> -> vector<8x8xf32>
    %cst_16 = arith.constant dense<0xFF800000> : vector<8xf32>
    %29 = vector.multi_reduction <maximumf>, %28, %cst_16 [1] : vector<8x8xf32> to vector<8xf32>
    %30 = vector.shape_cast %29 : vector<8xf32> to vector<8x1xf32>
    %31 = vector.broadcast %30 : vector<8x1xf32> to vector<8x8xf32>
    %32 = arith.subf %28, %31 : vector<8x8xf32>
    %33 = math.exp %32 : vector<8x8xf32>
    %cst_17 = arith.constant dense<0.000000e+00> : vector<8xf32>
    %34 = vector.multi_reduction <add>, %33, %cst_17 [1] : vector<8x8xf32> to vector<8xf32>
    %35 = vector.shape_cast %34 : vector<8xf32> to vector<8x1xf32>
    %36 = tpu.reciprocal %35 {approx = true} : vector<8x1xf32> -> vector<8x1xf32>
    %37 = vector.broadcast %36 : vector<8x1xf32> to vector<8x8xf32>
    %38 = arith.mulf %33, %37 : vector<8x8xf32>
    %cst_18 = arith.constant dense<0.000000e+00> : vector<8x32xf32>
    %39 = tpu.matmul %38, %27, %cst_18 {dimension_numbers = #tpu.dot_dimension_numbers<[1], [0], [0], [1], [0, 0, 1, 1], [], []>} : vector<8x8xf32>, vector<8x32xf32>, vector<8x32xf32> -> vector<8x32xf32>
    %40 = vector.extract_strided_slice %5 {offsets = [0, 64], sizes = [8, 32], strides = [1, 1]} : vector<8x128xf32> to vector<8x32xf32>
    %41 = vector.extract_strided_slice %7 {offsets = [0, 64], sizes = [8, 32], strides = [1, 1]} : vector<8x128xf32> to vector<8x32xf32>
    %42 = vector.extract_strided_slice %9 {offsets = [0, 64], sizes = [8, 32], strides = [1, 1]} : vector<8x128xf32> to vector<8x32xf32>
    %cst_19 = arith.constant dense<0.000000e+00> : vector<8x8xf32>
    %43 = tpu.matmul %40, %41, %cst_19 {dimension_numbers = #tpu.dot_dimension_numbers<[1], [1], [0], [0], [0, 0, 1, 0], [], []>} : vector<8x32xf32>, vector<8x32xf32>, vector<8x8xf32> -> vector<8x8xf32>
    %cst_20 = arith.constant dense<0xFF800000> : vector<8xf32>
    %44 = vector.multi_reduction <maximumf>, %43, %cst_20 [1] : vector<8x8xf32> to vector<8xf32>
    %45 = vector.shape_cast %44 : vector<8xf32> to vector<8x1xf32>
    %46 = vector.broadcast %45 : vector<8x1xf32> to vector<8x8xf32>
    %47 = arith.subf %43, %46 : vector<8x8xf32>
    %48 = math.exp %47 : vector<8x8xf32>
    %cst_21 = arith.constant dense<0.000000e+00> : vector<8xf32>
    %49 = vector.multi_reduction <add>, %48, %cst_21 [1] : vector<8x8xf32> to vector<8xf32>
    %50 = vector.shape_cast %49 : vector<8xf32> to vector<8x1xf32>
    %51 = tpu.reciprocal %50 {approx = true} : vector<8x1xf32> -> vector<8x1xf32>
    %52 = vector.broadcast %51 : vector<8x1xf32> to vector<8x8xf32>
    %53 = arith.mulf %48, %52 : vector<8x8xf32>
    %cst_22 = arith.constant dense<0.000000e+00> : vector<8x32xf32>
    %54 = tpu.matmul %53, %42, %cst_22 {dimension_numbers = #tpu.dot_dimension_numbers<[1], [0], [0], [1], [0, 0, 1, 1], [], []>} : vector<8x8xf32>, vector<8x32xf32>, vector<8x32xf32> -> vector<8x32xf32>
    %55 = vector.extract_strided_slice %5 {offsets = [0, 96], sizes = [8, 32], strides = [1, 1]} : vector<8x128xf32> to vector<8x32xf32>
    %56 = vector.extract_strided_slice %7 {offsets = [0, 96], sizes = [8, 32], strides = [1, 1]} : vector<8x128xf32> to vector<8x32xf32>
    %57 = vector.extract_strided_slice %9 {offsets = [0, 96], sizes = [8, 32], strides = [1, 1]} : vector<8x128xf32> to vector<8x32xf32>
    %cst_23 = arith.constant dense<0.000000e+00> : vector<8x8xf32>
    %58 = tpu.matmul %55, %56, %cst_23 {dimension_numbers = #tpu.dot_dimension_numbers<[1], [1], [0], [0], [0, 0, 1, 0], [], []>} : vector<8x32xf32>, vector<8x32xf32>, vector<8x8xf32> -> vector<8x8xf32>
    %cst_24 = arith.constant dense<0xFF800000> : vector<8xf32>
    %59 = vector.multi_reduction <maximumf>, %58, %cst_24 [1] : vector<8x8xf32> to vector<8xf32>
    %60 = vector.shape_cast %59 : vector<8xf32> to vector<8x1xf32>
    %61 = vector.broadcast %60 : vector<8x1xf32> to vector<8x8xf32>
    %62 = arith.subf %58, %61 : vector<8x8xf32>
    %63 = math.exp %62 : vector<8x8xf32>
    %cst_25 = arith.constant dense<0.000000e+00> : vector<8xf32>
    %64 = vector.multi_reduction <add>, %63, %cst_25 [1] : vector<8x8xf32> to vector<8xf32>
    %65 = vector.shape_cast %64 : vector<8xf32> to vector<8x1xf32>
    %66 = tpu.reciprocal %65 {approx = true} : vector<8x1xf32> -> vector<8x1xf32>
    %67 = vector.broadcast %66 : vector<8x1xf32> to vector<8x8xf32>
    %68 = arith.mulf %63, %67 : vector<8x8xf32>
    %cst_26 = arith.constant dense<0.000000e+00> : vector<8x32xf32>
    %69 = tpu.matmul %68, %57, %cst_26 {dimension_numbers = #tpu.dot_dimension_numbers<[1], [0], [0], [1], [0, 0, 1, 1], [], []>} : vector<8x8xf32>, vector<8x32xf32>, vector<8x32xf32> -> vector<8x32xf32>
    %70 = tpu.concatenate %24, %39, %54, %69 in 1 : vector<8x32xf32>, vector<8x32xf32>, vector<8x32xf32>, vector<8x32xf32> -> vector<8x128xf32>
    %c0_27 = arith.constant 0 : index
    %c0_28 = arith.constant 0 : index
    %71 = vector.load %arg5[%c0_27, %c0_28] : memref<128x32xf32, #tpu.memory_space<vmem>>, vector<128x32xf32>
    %cst_29 = arith.constant dense<0.000000e+00> : vector<8x32xf32>
    %72 = tpu.matmul %70, %71, %cst_29 {dimension_numbers = #tpu.dot_dimension_numbers<[1], [0], [0], [1], [0, 0, 1, 1], [], []>} : vector<8x128xf32>, vector<128x32xf32>, vector<8x32xf32> -> vector<8x32xf32>
    %c0_30 = arith.constant 0 : index
    %c0_31 = arith.constant 0 : index
    %73 = vector.load %arg6[%c0_30, %c0_31] : memref<1x32xf32, #tpu.memory_space<vmem>>, vector<1x32xf32>
    %74 = vector.broadcast %73 : vector<1x32xf32> to vector<8x32xf32>
    %75 = arith.addf %72, %74 : vector<8x32xf32>
    %76 = arith.addf %75, %1 : vector<8x32xf32>
    %cst_32 = arith.constant dense<0.000000e+00> : vector<8xf32>
    %77 = vector.multi_reduction <add>, %76, %cst_32 [1] : vector<8x32xf32> to vector<8xf32>
    %78 = vector.shape_cast %77 : vector<8xf32> to vector<8x1xf32>
    %cst_33 = arith.constant 3.200000e+01 : f32
    %79 = vector.broadcast %cst_33 : f32 to vector<8x1xf32>
    %80 = arith.divf %78, %79 : vector<8x1xf32>
    %81 = vector.broadcast %80 : vector<8x1xf32> to vector<8x32xf32>
    %82 = arith.subf %76, %81 : vector<8x32xf32>
    %83 = arith.mulf %82, %82 : vector<8x32xf32>
    %cst_34 = arith.constant dense<0.000000e+00> : vector<8xf32>
    %84 = vector.multi_reduction <add>, %83, %cst_34 [1] : vector<8x32xf32> to vector<8xf32>
    %85 = vector.shape_cast %84 : vector<8xf32> to vector<8x1xf32>
    %cst_35 = arith.constant 3.100000e+01 : f32
    %86 = vector.broadcast %cst_35 : f32 to vector<8x1xf32>
    %87 = arith.divf %85, %86 : vector<8x1xf32>
    %88 = math.sqrt %87 : vector<8x1xf32>
    %cst_36 = arith.constant 1.000000e-03 : f32
    %89 = vector.broadcast %cst_36 : f32 to vector<8x1xf32>
    %90 = arith.addf %88, %89 : vector<8x1xf32>
    %91 = tpu.reciprocal %90 : vector<8x1xf32> -> vector<8x1xf32>
    %92 = vector.broadcast %91 : vector<8x1xf32> to vector<8x32xf32>
    %93 = arith.mulf %82, %92 : vector<8x32xf32>
    %c0_37 = arith.constant 0 : index
    %c0_38 = arith.constant 0 : index
    %94 = vector.load %arg7[%c0_37, %c0_38] : memref<1x32xf32, #tpu.memory_space<vmem>>, vector<1x32xf32>
    %95 = vector.broadcast %94 : vector<1x32xf32> to vector<8x32xf32>
    %96 = arith.mulf %93, %95 : vector<8x32xf32>
    %c0_39 = arith.constant 0 : index
    %c0_40 = arith.constant 0 : index
    %97 = vector.load %arg8[%c0_39, %c0_40] : memref<1x32xf32, #tpu.memory_space<vmem>>, vector<1x32xf32>
    %98 = vector.broadcast %97 : vector<1x32xf32> to vector<8x32xf32>
    %99 = arith.addf %96, %98 : vector<8x32xf32>
    %100 = vector.shape_cast %99 : vector<8x32xf32> to vector<1x8x32xf32>
    %c0_41 = arith.constant 0 : index
    %c0_42 = arith.constant 0 : index
    %c0_43 = arith.constant 0 : index
    %101 = vector.load %arg9[%c0_41, %c0_42, %c0_43] : memref<1x8x32xf32, #tpu.memory_space<vmem>>, vector<1x8x32xf32>
    tpu.vector_store %arg9[%c0_41, %c0_42, %c0_43], %100 {strides = array<i32>} : memref<1x8x32xf32, #tpu.memory_space<vmem>>, vector<1x8x32xf32>,
    return
  }
  func.func @transform_0(%arg0: i32) -> (i32, i32, i32) {
    %c0_i32 = arith.constant 0 : i32
    %c0_i32_0 = arith.constant 0 : i32
    %c0_i32_1 = arith.constant 0 : i32
    return %arg0, %c0_i32, %c0_i32_0 : i32, i32, i32
  }
  func.func @transform_1(%arg0: i32) -> (i32, i32) {
    %c0_i32 = arith.constant 0 : i32
    %c0_i32_0 = arith.constant 0 : i32
    %c0_i32_1 = arith.constant 0 : i32
    return %c0_i32, %c0_i32_0 : i32, i32
  }
  func.func @transform_2(%arg0: i32) -> (i32, i32) {
    %c0_i32 = arith.constant 0 : i32
    %c0_i32_0 = arith.constant 0 : i32
    %c0_i32_1 = arith.constant 0 : i32
    return %c0_i32, %c0_i32_0 : i32, i32
  }
  func.func @transform_3(%arg0: i32) -> (i32, i32) {
    %c0_i32 = arith.constant 0 : i32
    %c0_i32_0 = arith.constant 0 : i32
    %c0_i32_1 = arith.constant 0 : i32
    return %c0_i32, %c0_i32_0 : i32, i32
  }
  func.func @transform_4(%arg0: i32) -> (i32, i32) {
    %c0_i32 = arith.constant 0 : i32
    %c0_i32_0 = arith.constant 0 : i32
    %c0_i32_1 = arith.constant 0 : i32
    return %c0_i32, %c0_i32_0 : i32, i32
  }
  func.func @transform_5(%arg0: i32) -> (i32, i32) {
    %c0_i32 = arith.constant 0 : i32
    %c0_i32_0 = arith.constant 0 : i32
    %c0_i32_1 = arith.constant 0 : i32
    return %c0_i32, %c0_i32_0 : i32, i32
  }
  func.func @transform_6(%arg0: i32) -> (i32, i32) {
    %c0_i32 = arith.constant 0 : i32
    %c0_i32_0 = arith.constant 0 : i32
    %c0_i32_1 = arith.constant 0 : i32
    return %c0_i32, %c0_i32_0 : i32, i32
  }
  func.func @transform_7(%arg0: i32) -> (i32, i32) {
    %c0_i32 = arith.constant 0 : i32
    %c0_i32_0 = arith.constant 0 : i32
    %c0_i32_1 = arith.constant 0 : i32
    return %c0_i32, %c0_i32_0 : i32, i32
  }
  func.func @transform_8(%arg0: i32) -> (i32, i32, i32) {
    %c0_i32 = arith.constant 0 : i32
    %c0_i32_0 = arith.constant 0 : i32
    %c0_i32_1 = arith.constant 0 : i32
    return %arg0, %c0_i32, %c0_i32_0 : i32, i32, i32
  }
}

</mosaic_0001>

<llo_original>
// kernel: tpu_custom_call.1
$region0: #{tpu_custom_call.1}
  #allocation0 [shape = 'u32[]', space=smem, size = 0x4, offset = 0x4, fixed_abs, tag = 'smem constant byte address 0x4 - core index']
  #allocation1 [shape = 'u32[144,128]{1,0:T(1,128)}', space=vmem, size = 0x12000, scoped, tag = 'internal scratch']
  %s0 = inlined_call_operand.vmem [shape: f32[2,8,32], index: 0, kind: input, shape index: {}]
  %s1 = inlined_call_operand.vmem [shape: f32[32,128], index: 1, kind: input, shape index: {}]
  %s2 = inlined_call_operand.vmem [shape: f32[32,128], index: 2, kind: input, shape index: {}]
  %s3 = inlined_call_operand.vmem [shape: f32[32,128], index: 3, kind: input, shape index: {}]
  %s4 = inlined_call_operand.vmem [shape: f32[128,32], index: 4, kind: input, shape index: {}]
  %s5 = inlined_call_operand.vmem [shape: f32[1,32], index: 5, kind: input, shape index: {}]
  %s6 = inlined_call_operand.vmem [shape: f32[1,32], index: 6, kind: input, shape index: {}]
  %s7 = inlined_call_operand.vmem [shape: f32[1,32], index: 7, kind: input, shape index: {}]
  %s8 = inlined_call_operand.hbm [shape: f32[2,8,32], index: 8, kind: output, shape index: {}]
  %s9 = sld [smem:[#allocation0]]
  $region65: #{tpu_custom_call.1} parent=0
    _
  %s11 = ssub.s32 1, %s9
  %s12 = scalar_select 0, %s11, %s9
  $region1: #{tpu_custom_call.1} parent=0
    #allocation2 [shape = 'u8[8192]{0}', space=vmem, size = 0x2000, scoped, tag = 'output window, operand 0']
    #allocation3 [shape = 's32[2]{0}', space=sflag, size = 0x8, scoped, tag = 'scoped memory for tpu_custom_call.1']
    %13 = vsyncpa [#allocation3], 0
    %s14 = scalar_lea.sflag [#allocation3], 1
    %15 = vsyncpa %s14, 0
    loop: start=0, step=1, limit=4
    $region2: #{tpu_custom_call.1} parent=1 // loop_pre_header
      _
    $region3: #{tpu_custom_call.1} parent=1 // loop_header
      %s17 = sphi 0, %s21
      %p18 = scmp.ge.s32.totalorder %s17, 4
      %s27 = sphi 0, %s29
      %s30 = sphi 0, %s27
      %s31 = sphi 0, %s30
      %s47 = sphi 0, %s31
      %s51 = sphi 0, %s51
      %s53 = sphi 0, %s51
      %s54 = sphi 0, %s53
      %s68 = sphi 0, %s54
      %s72 = sphi 0, %s72
      %s74 = sphi 0, %s72
      %s75 = sphi 0, %s74
      %s89 = sphi 0, %s75
      %s93 = sphi 0, %s93
      %s95 = sphi 0, %s93
      %s96 = sphi 0, %s95
      %s110 = sphi 0, %s96
      %s114 = sphi 0, %s114
      %s116 = sphi 0, %s114
      %s117 = sphi 0, %s116
      %s131 = sphi 0, %s117
      %s135 = sphi 0, %s135
      %s137 = sphi 0, %s135
      %s138 = sphi 0, %s137
      %s152 = sphi 0, %s138
      %s156 = sphi 0, %s156
      %s158 = sphi 0, %s156
      %s159 = sphi 0, %s158
      %s173 = sphi 0, %s159
      %s177 = sphi 0, %s177
      %s179 = sphi 0, %s177
      %s180 = sphi 0, %s179
      %s194 = sphi 0, %s180
      %s200 = sphi 0, %s202
      %s203 = sphi 0, %s200
      %s204 = sphi 0, %s203
      %s220 = sphi 0, %s204
    $region4: #{tpu_custom_call.1} parent=1 // loop_header_branch
      %20 = sbr.rel (%p18) target = $region8
    $region5: #{tpu_custom_call.1} parent=1 // loop_body
      %s22 = ssub.s32 %s17, 1
      %s23 = ssub.s32 %s17, 2
      %s24 = sadd.s32 %s17, 1
      %s25 = ssub.s32 %s17, %s24
      %p26 = scmp.eq.s32.totalorder %s25, 0
      %s28 = sadd.s32 %s27, 1
      %s29 = scalar_select %p26, %s27, %s28
      %p32 = pneg %p26
      %p33 = scmp.eq.s32.totalorder %s17, 1
      %p34 = por %p32, %p33
      %p35 = scmp.ne.s32.totalorder %s27, %s30
      %p36 = scmp.eq.s32.totalorder %s17, 0
      %p37 = por %p35, %p36
      %p38 = scmp.ne.s32.totalorder %s27, %s30
      %p39 = scmp.eq.s32.totalorder %s22, 1
      %p40 = por %p38, %p39
      %p41 = scmp.ne.s32.totalorder %s30, %s31
      %p42 = scmp.eq.s32.totalorder %s22, 0
      %p43 = por %p41, %p42
      %p44 = scmp.ne.s32.totalorder %s30, %s31
      %p45 = scmp.eq.s32.totalorder %s23, 1
      %p46 = por %p44, %p45
      %p48 = scmp.ne.s32.totalorder %s31, %s47
      %p49 = scmp.eq.s32.totalorder %s23, 0
      %p50 = por %p48, %p49
      %s52 = sadd.s32 %s51, 1
      %p55 = scmp.eq.s32.totalorder %s17, 1
      %p56 = scmp.ne.s32.totalorder %s51, %s53
      %p57 = scmp.eq.s32.totalorder %s17, 0
      %p58 = por %p56, %p57
      %p59 = scmp.ne.s32.totalorder %s51, %s53
      %p60 = scmp.eq.s32.totalorder %s22, 1
      %p61 = por %p59, %p60
      %p62 = scmp.ne.s32.totalorder %s53, %s54
      %p63 = scmp.eq.s32.totalorder %s22, 0
      %p64 = por %p62, %p63
      %p65 = scmp.ne.s32.totalorder %s53, %s54
      %p66 = scmp.eq.s32.totalorder %s23, 1
      %p67 = por %p65, %p66
      %p69 = scmp.ne.s32.totalorder %s54, %s68
      %p70 = scmp.eq.s32.totalorder %s23, 0
      %p71 = por %p69, %p70
      %s73 = sadd.s32 %s72, 1
      %p76 = scmp.eq.s32.totalorder %s17, 1
      %p77 = scmp.ne.s32.totalorder %s72, %s74
      %p78 = scmp.eq.s32.totalorder %s17, 0
      %p79 = por %p77, %p78
      %p80 = scmp.ne.s32.totalorder %s72, %s74
      %p81 = scmp.eq.s32.totalorder %s22, 1
      %p82 = por %p80, %p81
      %p83 = scmp.ne.s32.totalorder %s74, %s75
      %p84 = scmp.eq.s32.totalorder %s22, 0
      %p85 = por %p83, %p84
      %p86 = scmp.ne.s32.totalorder %s74, %s75
      %p87 = scmp.eq.s32.totalorder %s23, 1
      %p88 = por %p86, %p87
      %p90 = scmp.ne.s32.totalorder %s75, %s89
      %p91 = scmp.eq.s32.totalorder %s23, 0
      %p92 = por %p90, %p91
      %s94 = sadd.s32 %s93, 1
      %p97 = scmp.eq.s32.totalorder %s17, 1
      %p98 = scmp.ne.s32.totalorder %s93, %s95
      %p99 = scmp.eq.s32.totalorder %s17, 0
      %p100 = por %p98, %p99
      %p101 = scmp.ne.s32.totalorder %s93, %s95
      %p102 = scmp.eq.s32.totalorder %s22, 1
      %p103 = por %p101, %p102
      %p104 = scmp.ne.s32.totalorder %s95, %s96
      %p105 = scmp.eq.s32.totalorder %s22, 0
      %p106 = por %p104, %p105
      %p107 = scmp.ne.s32.totalorder %s95, %s96
      %p108 = scmp.eq.s32.totalorder %s23, 1
      %p109 = por %p107, %p108
      %p111 = scmp.ne.s32.totalorder %s96, %s110
      %p112 = scmp.eq.s32.totalorder %s23, 0
      %p113 = por %p111, %p112
      %s115 = sadd.s32 %s114, 1
      %p118 = scmp.eq.s32.totalorder %s17, 1
      %p119 = scmp.ne.s32.totalorder %s114, %s116
      %p120 = scmp.eq.s32.totalorder %s17, 0
      %p121 = por %p119, %p120
      %p122 = scmp.ne.s32.totalorder %s114, %s116
      %p123 = scmp.eq.s32.totalorder %s22, 1
      %p124 = por %p122, %p123
      %p125 = scmp.ne.s32.totalorder %s116, %s117
      %p126 = scmp.eq.s32.totalorder %s22, 0
      %p127 = por %p125, %p126
      %p128 = scmp.ne.s32.totalorder %s116, %s117
      %p129 = scmp.eq.s32.totalorder %s23, 1
      %p130 = por %p128, %p129
      %p132 = scmp.ne.s32.totalorder %s117, %s131
      %p133 = scmp.eq.s32.totalorder %s23, 0
      %p134 = por %p132, %p133
      %s136 = sadd.s32 %s135, 1
      %p139 = scmp.eq.s32.totalorder %s17, 1
      %p140 = scmp.ne.s32.totalorder %s135, %s137
      %p141 = scmp.eq.s32.totalorder %s17, 0
      %p142 = por %p140, %p141
      %p143 = scmp.ne.s32.totalorder %s135, %s137
      %p144 = scmp.eq.s32.totalorder %s22, 1
      %p145 = por %p143, %p144
      %p146 = scmp.ne.s32.totalorder %s137, %s138
      %p147 = scmp.eq.s32.totalorder %s22, 0
      %p148 = por %p146, %p147
      %p149 = scmp.ne.s32.totalorder %s137, %s138
      %p150 = scmp.eq.s32.totalorder %s23, 1
      %p151 = por %p149, %p150
      %p153 = scmp.ne.s32.totalorder %s138, %s152
      %p154 = scmp.eq.s32.totalorder %s23, 0
      %p155 = por %p153, %p154
      %s157 = sadd.s32 %s156, 1
      %p160 = scmp.eq.s32.totalorder %s17, 1
      %p161 = scmp.ne.s32.totalorder %s156, %s158
      %p162 = scmp.eq.s32.totalorder %s17, 0
      %p163 = por %p161, %p162
      %p164 = scmp.ne.s32.totalorder %s156, %s158
      %p165 = scmp.eq.s32.totalorder %s22, 1
      %p166 = por %p164, %p165
      %p167 = scmp.ne.s32.totalorder %s158, %s159
      %p168 = scmp.eq.s32.totalorder %s22, 0
      %p169 = por %p167, %p168
      %p170 = scmp.ne.s32.totalorder %s158, %s159
      %p171 = scmp.eq.s32.totalorder %s23, 1
      %p172 = por %p170, %p171
      %p174 = scmp.ne.s32.totalorder %s159, %s173
      %p175 = scmp.eq.s32.totalorder %s23, 0
      %p176 = por %p174, %p175
      %s178 = sadd.s32 %s177, 1
      %p181 = scmp.eq.s32.totalorder %s17, 1
      %p182 = scmp.ne.s32.totalorder %s177, %s179
      %p183 = scmp.eq.s32.totalorder %s17, 0
      %p184 = por %p182, %p183
      %p185 = scmp.ne.s32.totalorder %s177, %s179
      %p186 = scmp.eq.s32.totalorder %s22, 1
      %p187 = por %p185, %p186
      %p188 = scmp.ne.s32.totalorder %s179, %s180
      %p189 = scmp.eq.s32.totalorder %s22, 0
      %p190 = por %p188, %p189
      %p191 = scmp.ne.s32.totalorder %s179, %s180
      %p192 = scmp.eq.s32.totalorder %s23, 1
      %p193 = por %p191, %p192
      %p195 = scmp.ne.s32.totalorder %s180, %s194
      %p196 = scmp.eq.s32.totalorder %s23, 0
      %p197 = por %p195, %p196
      %s198 = ssub.s32 %s17, %s24
      %p199 = scmp.eq.s32.totalorder %s198, 0
      %s201 = sadd.s32 %s200, 1
      %s202 = scalar_select %p199, %s200, %s201
      %p205 = pneg %p199
      %p206 = scmp.eq.s32.totalorder %s17, 1
      %p207 = por %p205, %p206
      %p208 = scmp.ne.s32.totalorder %s200, %s203
      %p209 = scmp.eq.s32.totalorder %s17, 0
      %p210 = por %p208, %p209
      %p211 = scmp.ne.s32.totalorder %s200, %s203
      %p212 = scmp.eq.s32.totalorder %s22, 1
      %p213 = por %p211, %p212
      %p214 = scmp.ne.s32.totalorder %s203, %s204
      %p215 = scmp.eq.s32.totalorder %s22, 0
      %p216 = por %p214, %p215
      %p217 = scmp.ne.s32.totalorder %s203, %s204
      %p218 = scmp.eq.s32.totalorder %s23, 1
      %p219 = por %p217, %p218
      %p221 = scmp.ne.s32.totalorder %s204, %s220
      %p222 = scmp.eq.s32.totalorder %s23, 0
      %p223 = por %p221, %p222
      %p224 = scmp.le.s32.totalorder 1, %s17
      %p225 = scmp.lt.s32.totalorder %s17, 3
      %p226 = pnand %p224, %p225
      %p227 = pneg %p226
      // Predicated region
      $region9: #{tpu_custom_call.1} parent=5 // pred_check
        _
      $region10: #{tpu_custom_call.1} parent=5 // pred_check_branch
        %229 = sbr.rel (%p226) target = $region12
      $region11: #{tpu_custom_call.1} parent=5 // pred_region
        %s230 = ssub.s32 %s17, 1
        // Predicated region
        $region13: #{tpu_custom_call.1} parent=11 // pred_check
          %p231 = pneg %p64
        $region14: #{tpu_custom_call.1} parent=11 // pred_check_branch
          %233 = sbr.rel (%p231) target = $region16
        $region15: #{tpu_custom_call.1} parent=11 // pred_region
          _
        $region16: #{tpu_custom_call.1} parent=11 // pred_fallthru
          _
        // Predicated region
        $region17: #{tpu_custom_call.1} parent=11 // pred_check
          %p234 = pneg %p85
        $region18: #{tpu_custom_call.1} parent=11 // pred_check_branch
          %236 = sbr.rel (%p234) target = $region20
        $region19: #{tpu_custom_call.1} parent=11 // pred_region
          _
        $region20: #{tpu_custom_call.1} parent=11 // pred_fallthru
          _
        // Predicated region
        $region21: #{tpu_custom_call.1} parent=11 // pred_check
          %p237 = pneg %p106
        $region22: #{tpu_custom_call.1} parent=11 // pred_check_branch
          %239 = sbr.rel (%p237) target = $region24
        $region23: #{tpu_custom_call.1} parent=11 // pred_region
          _
        $region24: #{tpu_custom_call.1} parent=11 // pred_fallthru
          _
        // Predicated region
        $region25: #{tpu_custom_call.1} parent=11 // pred_check
          %p240 = pneg %p127
        $region26: #{tpu_custom_call.1} parent=11 // pred_check_branch
          %242 = sbr.rel (%p240) target = $region28
        $region27: #{tpu_custom_call.1} parent=11 // pred_region
          _
        $region28: #{tpu_custom_call.1} parent=11 // pred_fallthru
          _
        // Predicated region
        $region29: #{tpu_custom_call.1} parent=11 // pred_check
          %p243 = pneg %p148
        $region30: #{tpu_custom_call.1} parent=11 // pred_check_branch
          %245 = sbr.rel (%p243) target = $region32
        $region31: #{tpu_custom_call.1} parent=11 // pred_region
          _
        $region32: #{tpu_custom_call.1} parent=11 // pred_fallthru
          _
        // Predicated region
        $region33: #{tpu_custom_call.1} parent=11 // pred_check
          %p246 = pneg %p169
        $region34: #{tpu_custom_call.1} parent=11 // pred_check_branch
          %248 = sbr.rel (%p246) target = $region36
        $region35: #{tpu_custom_call.1} parent=11 // pred_region
          _
        $region36: #{tpu_custom_call.1} parent=11 // pred_fallthru
          _
        // Predicated region
        $region37: #{tpu_custom_call.1} parent=11 // pred_check
          %p249 = pneg %p190
        $region38: #{tpu_custom_call.1} parent=11 // pred_check_branch
          %251 = sbr.rel (%p249) target = $region40
        $region39: #{tpu_custom_call.1} parent=11 // pred_region
          _
        $region40: #{tpu_custom_call.1} parent=11 // pred_fallthru
          _
      $region12: #{tpu_custom_call.1} parent=5 // pred_fallthru
        _
      %p252 = scmp.lt.s32.totalorder %s17, 2
      // Predicated region
      $region41: #{tpu_custom_call.1} parent=5 // pred_check
        %p253 = pneg %p252
      $region42: #{tpu_custom_call.1} parent=5 // pred_check_branch
        %255 = sbr.rel (%p253) target = $region44
      $region43: #{tpu_custom_call.1} parent=5 // pred_region
        // Predicated region
        $region45: #{tpu_custom_call.1} parent=43 // pred_check
          %p256 = pneg %p37
        $region46: #{tpu_custom_call.1} parent=43 // pred_check_branch
          %258 = sbr.rel (%p256) target = $region48
        $region47: #{tpu_custom_call.1} parent=43 // pred_region
          %p259 = scmp.lt.s32.totalorder %s17, 1
          %s260 = scalar_select %p259, %s17, 1
          %s261 = smul.addr %s260, 8
          %s262 = scalar_lea.vmem %s0, %s261
        $region48: #{tpu_custom_call.1} parent=43 // pred_fallthru
          _
      $region44: #{tpu_custom_call.1} parent=5 // pred_fallthru
        _
      %p263 = scmp.le.s32.totalorder 1, %s17
      %p264 = scmp.lt.s32.totalorder %s17, 3
      %p265 = pnand %p263, %p264
      %p266 = pneg %p265
      // Predicated region
      $region49: #{tpu_custom_call.1} parent=5 // pred_check
        _
      $region50: #{tpu_custom_call.1} parent=5 // pred_check_branch
        %268 = sbr.rel (%p265) target = $region52
      $region51: #{tpu_custom_call.1} parent=5 // pred_region
        %s269 = ssub.s32 %s17, 1
        %p270 = scmp.lt.s32.totalorder %s22, 1
        %s271 = scalar_select %p270, %s22, 1
        %s272 = smul.addr %s271, 8
        %s273 = scalar_lea.vmem %s0, %s272
        %p274 = pneg %p43
        %p275 = pneg %p40
        %p276 = pneg %p64
        %p277 = pneg %p61
        %p278 = pneg %p85
        %p279 = pneg %p82
        %p280 = pneg %p106
        %p281 = pneg %p103
        %p282 = pneg %p127
        %p283 = pneg %p124
        %p284 = pneg %p148
        %p285 = pneg %p145
        %p286 = pneg %p169
        %p287 = pneg %p166
        %p288 = pneg %p190
        %p289 = pneg %p187
        %p290 = pneg %p216
        %p291 = pneg %p213
        %s292 = sand.u32 %s203, 1
        %s293 = scalar_lea.sflag [#allocation3], %s292
        %s294 = sand.u32 %s203, 1
        %s295 = smul.addr %s294, 8
        %s296 = scalar_lea.vmem [#allocation2], %s295
        %p297 = scmp.lt.s32.totalorder %s22, 1
        %s298 = scalar_select %p297, %s22, 1
        %s299 = smul.addr %s298, 8
        %s300 = scalar_lea.vmem %s0, %s299
        %v301 = vld [vmem:[%s300] sm:$0xff]
        %v302 = vld [vmem:[%s1] sm:$0xff]
        %v303 = vld [vmem:[%s1 + $0x8] sm:$0xff]
        %v304 = vld [vmem:[%s1 + $0x10] sm:$0xff]
        %v305 = vld [vmem:[%s1 + $0x18] sm:$0xff]
        %vm306 = vcmask 261120
        %v308 = vsel %vm306, %v301, 0
        %310 = vmatprep.subr.mxu0 0.0
        %311 = vmatpush1.msra.mxu0 0.0
        %312 = vmatprep.subr.mxu0 0.0
        %313 = vmatpush1.msra.mxu0 0.0
        %314 = vmatprep.subr.mxu0 0.0
        %315 = vmatpush1.msra.mxu0 0.0
        %316 = vmatprep.subr.mxu0 0.0
        %317 = vmatpush1.msra.mxu0 0.0
        %318 = vmatprep.subr.mxu0 0.0
        %319 = vmatpush1.msra.mxu0 0.0
        %320 = vmatprep.subr.mxu0 0.0
        %321 = vmatpush1.msra.mxu0 0.0
        %322 = vmatprep.subr.mxu0 0.0
        %323 = vmatpush1.msra.mxu0 0.0
        %324 = vmatprep.subr.mxu0 0.0
        %325 = vmatpush1.msra.mxu0 0.0
        %326 = vmatprep.subr.mxu0 0.0
        %327 = vmatpush1.msra.mxu0 0.0
        %328 = vmatprep.subr.mxu0 0.0
        %329 = vmatpush1.msra.mxu0 0.0
        %330 = vmatprep.subr.mxu0 0.0
        %331 = vmatpush1.msra.mxu0 0.0
        %332 = vmatprep.subr.mxu0 0.0
        %333 = vmatpush1.msra.mxu0 0.0
        %334 = vmatprep.subr.mxu0 0.0
        %335 = vmatpush1.msra.mxu0 %v305
        %336 = vmatprep.subr.mxu0 0.0
        %337 = vmatpush1.msra.mxu0 %v304
        %338 = vmatprep.subr.mxu0 0.0
        %339 = vmatpush1.msra.mxu0 %v303
        %340 = vmatprep.subr.mxu0 0.0
        %341 = vmatpush1.msra.mxu0 %v302
        %342 = vmatprep.subr.mxu0 0.0
        %343 = vmatpush2.msra.mxu0 0.0
        %344 = vmatprep.subr.mxu0 0.0
        %345 = vmatpush2.msra.mxu0 0.0
        %346 = vmatprep.subr.mxu0 0.0
        %347 = vmatpush2.msra.mxu0 0.0
        %348 = vmatprep.subr.mxu0 0.0
        %349 = vmatpush2.msra.mxu0 0.0
        %350 = vmatprep.subr.mxu0 0.0
        %351 = vmatpush2.msra.mxu0 0.0
        %352 = vmatprep.subr.mxu0 0.0
        %353 = vmatpush2.msra.mxu0 0.0
        %354 = vmatprep.subr.mxu0 0.0
        %355 = vmatpush2.msra.mxu0 0.0
        %356 = vmatprep.subr.mxu0 0.0
        %357 = vmatpush2.msra.mxu0 0.0
        %358 = vmatprep.subr.mxu0 0.0
        %359 = vmatpush2.msra.mxu0 0.0
        %360 = vmatprep.subr.mxu0 0.0
        %361 = vmatpush2.msra.mxu0 0.0
        %362 = vmatprep.subr.mxu0 0.0
        %363 = vmatpush2.msra.mxu0 0.0
        %364 = vmatprep.subr.mxu0 0.0
        %365 = vmatpush2.msra.mxu0 0.0
        %366 = vmatprep.subr.mxu0 0.0
        %367 = vmatpush2.msra.mxu0 0.0
        %368 = vmatprep.subr.mxu0 0.0
        %369 = vmatpush2.msra.mxu0 0.0
        %370 = vmatprep.subr.mxu0 0.0
        %371 = vmatpush2.msra.mxu0 0.0
        %372 = vmatprep.subr.mxu0 0.0
        %373 = vmatpush2.msra.mxu0 0.0
        %374 = vmatprep.mubr.f32.mxu0 0.0
        %375 = vmatmul.mubr.f32.gmra.mxu0 %v308
        %v376 = vpop.f32.mrf.mxu0
        %v377 = vadd.f32 0.0, %v376
        %v378 = vpop.f32.mrf.mxu0
        %379 = vdwg.mxu0
        %v380 = vmul.f32 %v377, 0.17677669
        %v381 = vld [vmem:[%s2] sm:$0xff]
        %v382 = vld [vmem:[%s2 + $0x8] sm:$0xff]
        %v383 = vld [vmem:[%s2 + $0x10] sm:$0xff]
        %v384 = vld [vmem:[%s2 + $0x18] sm:$0xff]
        %385 = vmatprep.subr.mxu0 0.0
        %386 = vmatpush1.msra.mxu0 0.0
        %387 = vmatprep.subr.mxu0 0.0
        %388 = vmatpush1.msra.mxu0 0.0
        %389 = vmatprep.subr.mxu0 0.0
        %390 = vmatpush1.msra.mxu0 0.0
        %391 = vmatprep.subr.mxu0 0.0
        %392 = vmatpush1.msra.mxu0 0.0
        %393 = vmatprep.subr.mxu0 0.0
        %394 = vmatpush1.msra.mxu0 0.0
        %395 = vmatprep.subr.mxu0 0.0
        %396 = vmatpush1.msra.mxu0 0.0
        %397 = vmatprep.subr.mxu0 0.0
        %398 = vmatpush1.msra.mxu0 0.0
        %399 = vmatprep.subr.mxu0 0.0
        %400 = vmatpush1.msra.mxu0 0.0
        %401 = vmatprep.subr.mxu0 0.0
        %402 = vmatpush1.msra.mxu0 0.0
        %403 = vmatprep.subr.mxu0 0.0
        %404 = vmatpush1.msra.mxu0 0.0
        %405 = vmatprep.subr.mxu0 0.0
        %406 = vmatpush1.msra.mxu0 0.0
        %407 = vmatprep.subr.mxu0 0.0
        %408 = vmatpush1.msra.mxu0 0.0
        %409 = vmatprep.subr.mxu0 0.0
        %410 = vmatpush1.msra.mxu0 %v384
        %411 = vmatprep.subr.mxu0 0.0
        %412 = vmatpush1.msra.mxu0 %v383
        %413 = vmatprep.subr.mxu0 0.0
        %414 = vmatpush1.msra.mxu0 %v382
        %415 = vmatprep.subr.mxu0 0.0
        %416 = vmatpush1.msra.mxu0 %v381
        %417 = vmatprep.subr.mxu0 0.0
        %418 = vmatpush2.msra.mxu0 0.0
        %419 = vmatprep.subr.mxu0 0.0
        %420 = vmatpush2.msra.mxu0 0.0
        %421 = vmatprep.subr.mxu0 0.0
        %422 = vmatpush2.msra.mxu0 0.0
        %423 = vmatprep.subr.mxu0 0.0
        %424 = vmatpush2.msra.mxu0 0.0
        %425 = vmatprep.subr.mxu0 0.0
        %426 = vmatpush2.msra.mxu0 0.0
        %427 = vmatprep.subr.mxu0 0.0
        %428 = vmatpush2.msra.mxu0 0.0
        %429 = vmatprep.subr.mxu0 0.0
        %430 = vmatpush2.msra.mxu0 0.0
        %431 = vmatprep.subr.mxu0 0.0
        %432 = vmatpush2.msra.mxu0 0.0
        %433 = vmatprep.subr.mxu0 0.0
        %434 = vmatpush2.msra.mxu0 0.0
        %435 = vmatprep.subr.mxu0 0.0
        %436 = vmatpush2.msra.mxu0 0.0
        %437 = vmatprep.subr.mxu0 0.0
        %438 = vmatpush2.msra.mxu0 0.0
        %439 = vmatprep.subr.mxu0 0.0
        %440 = vmatpush2.msra.mxu0 0.0
        %441 = vmatprep.subr.mxu0 0.0
        %442 = vmatpush2.msra.mxu0 0.0
        %443 = vmatprep.subr.mxu0 0.0
        %444 = vmatpush2.msra.mxu0 0.0
        %445 = vmatprep.subr.mxu0 0.0
        %446 = vmatpush2.msra.mxu0 0.0
        %447 = vmatprep.subr.mxu0 0.0
        %448 = vmatpush2.msra.mxu0 0.0
        %449 = vmatprep.mubr.f32.mxu0 0.0
        %450 = vmatmul.mubr.f32.gmra.mxu0 %v308
        %v451 = vpop.f32.mrf.mxu0
        %v452 = vadd.f32 0.0, %v451
        %v453 = vpop.f32.mrf.mxu0
        %454 = vdwg.mxu0
        %v455 = vld [vmem:[%s3] sm:$0xff]
        %v456 = vld [vmem:[%s3 + $0x8] sm:$0xff]
        %v457 = vld [vmem:[%s3 + $0x10] sm:$0xff]
        %v458 = vld [vmem:[%s3 + $0x18] sm:$0xff]
        %459 = vmatprep.subr.mxu0 0.0
        %460 = vmatpush1.msra.mxu0 0.0
        %461 = vmatprep.subr.mxu0 0.0
        %462 = vmatpush1.msra.mxu0 0.0
        %463 = vmatprep.subr.mxu0 0.0
        %464 = vmatpush1.msra.mxu0 0.0
        %465 = vmatprep.subr.mxu0 0.0
        %466 = vmatpush1.msra.mxu0 0.0
        %467 = vmatprep.subr.mxu0 0.0
        %468 = vmatpush1.msra.mxu0 0.0
        %469 = vmatprep.subr.mxu0 0.0
        %470 = vmatpush1.msra.mxu0 0.0
        %471 = vmatprep.subr.mxu0 0.0
        %472 = vmatpush1.msra.mxu0 0.0
        %473 = vmatprep.subr.mxu0 0.0
        %474 = vmatpush1.msra.mxu0 0.0
        %475 = vmatprep.subr.mxu0 0.0
        %476 = vmatpush1.msra.mxu0 0.0
        %477 = vmatprep.subr.mxu0 0.0
        %478 = vmatpush1.msra.mxu0 0.0
        %479 = vmatprep.subr.mxu0 0.0
        %480 = vmatpush1.msra.mxu0 0.0
        %481 = vmatprep.subr.mxu0 0.0
        %482 = vmatpush1.msra.mxu0 0.0
        %483 = vmatprep.subr.mxu0 0.0
        %484 = vmatpush1.msra.mxu0 %v458
        %485 = vmatprep.subr.mxu0 0.0
        %486 = vmatpush1.msra.mxu0 %v457
        %487 = vmatprep.subr.mxu0 0.0
        %488 = vmatpush1.msra.mxu0 %v456
        %489 = vmatprep.subr.mxu0 0.0
        %490 = vmatpush1.msra.mxu0 %v455
        %491 = vmatprep.subr.mxu0 0.0
        %492 = vmatpush2.msra.mxu0 0.0
        %493 = vmatprep.subr.mxu0 0.0
        %494 = vmatpush2.msra.mxu0 0.0
        %495 = vmatprep.subr.mxu0 0.0
        %496 = vmatpush2.msra.mxu0 0.0
        %497 = vmatprep.subr.mxu0 0.0
        %498 = vmatpush2.msra.mxu0 0.0
        %499 = vmatprep.subr.mxu0 0.0
        %500 = vmatpush2.msra.mxu0 0.0
        %501 = vmatprep.subr.mxu0 0.0
        %502 = vmatpush2.msra.mxu0 0.0
        %503 = vmatprep.subr.mxu0 0.0
        %504 = vmatpush2.msra.mxu0 0.0
        %505 = vmatprep.subr.mxu0 0.0
        %506 = vmatpush2.msra.mxu0 0.0
        %507 = vmatprep.subr.mxu0 0.0
        %508 = vmatpush2.msra.mxu0 0.0
        %509 = vmatprep.subr.mxu0 0.0
        %510 = vmatpush2.msra.mxu0 0.0
        %511 = vmatprep.subr.mxu0 0.0
        %512 = vmatpush2.msra.mxu0 0.0
        %513 = vmatprep.subr.mxu0 0.0
        %514 = vmatpush2.msra.mxu0 0.0
        %515 = vmatprep.subr.mxu0 0.0
        %516 = vmatpush2.msra.mxu0 0.0
        %517 = vmatprep.subr.mxu0 0.0
        %518 = vmatpush2.msra.mxu0 0.0
        %519 = vmatprep.subr.mxu0 0.0
        %520 = vmatpush2.msra.mxu0 0.0
        %521 = vmatprep.subr.mxu0 0.0
        %522 = vmatpush2.msra.mxu0 0.0
        %523 = vmatprep.mubr.f32.mxu0 0.0
        %524 = vmatmul.mubr.f32.gmra.mxu0 %v308
        %v525 = vpop.f32.mrf.mxu0
        %v526 = vadd.f32 0.0, %v525
        %v527 = vpop.f32.mrf.mxu0
        %528 = vdwg.mxu0
        %v530 = vsel %vm306, %v380, 0
        %v533 = vsel %vm306, %v452, 0
        %535 = vmatprep.subr.mxu0 0.0
        %536 = vmatpush1.xpose.msra.mxu0 0.0
        %537 = vmatprep.subr.mxu0 0.0
        %538 = vmatpush1.xpose.msra.mxu0 0.0
        %539 = vmatprep.subr.mxu0 0.0
        %540 = vmatpush1.xpose.msra.mxu0 0.0
        %541 = vmatprep.subr.mxu0 0.0
        %542 = vmatpush1.xpose.msra.mxu0 0.0
        %543 = vmatprep.subr.mxu0 0.0
        %544 = vmatpush1.xpose.msra.mxu0 0.0
        %545 = vmatprep.subr.mxu0 0.0
        %546 = vmatpush1.xpose.msra.mxu0 0.0
        %547 = vmatprep.subr.mxu0 0.0
        %548 = vmatpush1.xpose.msra.mxu0 0.0
        %549 = vmatprep.subr.mxu0 0.0
        %550 = vmatpush1.xpose.msra.mxu0 0.0
        %551 = vmatprep.subr.mxu0 0.0
        %552 = vmatpush1.xpose.msra.mxu0 0.0
        %553 = vmatprep.subr.mxu0 0.0
        %554 = vmatpush1.xpose.msra.mxu0 0.0
        %555 = vmatprep.subr.mxu0 0.0
        %556 = vmatpush1.xpose.msra.mxu0 0.0
        %557 = vmatprep.subr.mxu0 0.0
        %558 = vmatpush1.xpose.msra.mxu0 0.0
        %559 = vmatprep.subr.mxu0 0.0
        %560 = vmatpush1.xpose.msra.mxu0 0.0
        %561 = vmatprep.subr.mxu0 0.0
        %562 = vmatpush1.xpose.msra.mxu0 0.0
        %563 = vmatprep.subr.mxu0 0.0
        %564 = vmatpush1.xpose.msra.mxu0 0.0
        %565 = vmatprep.subr.mxu0 0.0
        %566 = vmatpush1.xpose.msra.mxu0 %v533
        %567 = vmatprep.subr.mxu0 0.0
        %568 = vmatpush2.xpose.msra.mxu0 0.0
        %569 = vmatprep.subr.mxu0 0.0
        %570 = vmatpush2.xpose.msra.mxu0 0.0
        %571 = vmatprep.subr.mxu0 0.0
        %572 = vmatpush2.xpose.msra.mxu0 0.0
        %573 = vmatprep.subr.mxu0 0.0
        %574 = vmatpush2.xpose.msra.mxu0 0.0
        %575 = vmatprep.subr.mxu0 0.0
        %576 = vmatpush2.xpose.msra.mxu0 0.0
        %577 = vmatprep.subr.mxu0 0.0
        %578 = vmatpush2.xpose.msra.mxu0 0.0
        %579 = vmatprep.subr.mxu0 0.0
        %580 = vmatpush2.xpose.msra.mxu0 0.0
        %581 = vmatprep.subr.mxu0 0.0
        %582 = vmatpush2.xpose.msra.mxu0 0.0
        %583 = vmatprep.subr.mxu0 0.0
        %584 = vmatpush2.xpose.msra.mxu0 0.0
        %585 = vmatprep.subr.mxu0 0.0
        %586 = vmatpush2.xpose.msra.mxu0 0.0
        %587 = vmatprep.subr.mxu0 0.0
        %588 = vmatpush2.xpose.msra.mxu0 0.0
        %589 = vmatprep.subr.mxu0 0.0
        %590 = vmatpush2.xpose.msra.mxu0 0.0
        %591 = vmatprep.subr.mxu0 0.0
        %592 = vmatpush2.xpose.msra.mxu0 0.0
        %593 = vmatprep.subr.mxu0 0.0
        %594 = vmatpush2.xpose.msra.mxu0 0.0
        %595 = vmatprep.subr.mxu0 0.0
        %596 = vmatpush2.xpose.msra.mxu0 0.0
        %597 = vmatprep.subr.mxu0 0.0
        %598 = vmatpush2.xpose.msra.mxu0 0.0
        %599 = vmatprep.mubr.f32.mxu0 0.0
        %600 = vmatmul.mubr.f32.gmra.mxu0 %v530
        %v601 = vpop.f32.mrf.mxu0
        %v602 = vadd.f32 0.0, %v601
        %v603 = vpop.f32.mrf.mxu0
        %604 = vdwg.mxu0
        %vm605 = vcmask 64512
        %v606 = vsel %vm605, %v602, -inf
        %607 = vmax.xlane.f32.xlu0 %v606
        %v608 = vpop.xlane.xlu0 %607
        %v609 = vsub.f32 %v602, %v608
        %v610 = vmul.f32 %v609, 1.442695
        %v611 = vpow.pop %v610
        %v612 = vsel %vm605, %v611, 0.0
        %613 = vadd.xlane.f32.xlu0 %v612
        %v614 = vpop.xlane.xlu0 %613
        %v615 = vrcp.pop %v614
        %v616 = vmul.f32 %v611, %v615
        %v618 = vsel %vm605, %v616, 0
        %620 = vmatprep.subr.mxu0 0.0
        %621 = vmatpush1.msra.mxu0 0.0
        %622 = vmatprep.subr.mxu0 0.0
        %623 = vmatpush1.msra.mxu0 0.0
        %624 = vmatprep.subr.mxu0 0.0
        %625 = vmatpush1.msra.mxu0 0.0
        %626 = vmatprep.subr.mxu0 0.0
        %627 = vmatpush1.msra.mxu0 0.0
        %628 = vmatprep.subr.mxu0 0.0
        %629 = vmatpush1.msra.mxu0 0.0
        %630 = vmatprep.subr.mxu0 0.0
        %631 = vmatpush1.msra.mxu0 0.0
        %632 = vmatprep.subr.mxu0 0.0
        %633 = vmatpush1.msra.mxu0 0.0
        %634 = vmatprep.subr.mxu0 0.0
        %635 = vmatpush1.msra.mxu0 0.0
        %636 = vmatprep.subr.mxu0 0.0
        %637 = vmatpush1.msra.mxu0 0.0
        %638 = vmatprep.subr.mxu0 0.0
        %639 = vmatpush1.msra.mxu0 0.0
        %640 = vmatprep.subr.mxu0 0.0
        %641 = vmatpush1.msra.mxu0 0.0
        %642 = vmatprep.subr.mxu0 0.0
        %643 = vmatpush1.msra.mxu0 0.0
        %644 = vmatprep.subr.mxu0 0.0
        %645 = vmatpush1.msra.mxu0 0.0
        %646 = vmatprep.subr.mxu0 0.0
        %647 = vmatpush1.msra.mxu0 0.0
        %648 = vmatprep.subr.mxu0 0.0
        %649 = vmatpush1.msra.mxu0 0.0
        %650 = vmatprep.subr.mxu0 0.0
        %651 = vmatpush1.msra.mxu0 %v526
        %652 = vmatprep.subr.mxu0 0.0
        %653 = vmatpush2.msra.mxu0 0.0
        %654 = vmatprep.subr.mxu0 0.0
        %655 = vmatpush2.msra.mxu0 0.0
        %656 = vmatprep.subr.mxu0 0.0
        %657 = vmatpush2.msra.mxu0 0.0
        %658 = vmatprep.subr.mxu0 0.0
        %659 = vmatpush2.msra.mxu0 0.0
        %660 = vmatprep.subr.mxu0 0.0
        %661 = vmatpush2.msra.mxu0 0.0
        %662 = vmatprep.subr.mxu0 0.0
        %663 = vmatpush2.msra.mxu0 0.0
        %664 = vmatprep.subr.mxu0 0.0
        %665 = vmatpush2.msra.mxu0 0.0
        %666 = vmatprep.subr.mxu0 0.0
        %667 = vmatpush2.msra.mxu0 0.0
        %668 = vmatprep.subr.mxu0 0.0
        %669 = vmatpush2.msra.mxu0 0.0
        %670 = vmatprep.subr.mxu0 0.0
        %671 = vmatpush2.msra.mxu0 0.0
        %672 = vmatprep.subr.mxu0 0.0
        %673 = vmatpush2.msra.mxu0 0.0
        %674 = vmatprep.subr.mxu0 0.0
        %675 = vmatpush2.msra.mxu0 0.0
        %676 = vmatprep.subr.mxu0 0.0
        %677 = vmatpush2.msra.mxu0 0.0
        %678 = vmatprep.subr.mxu0 0.0
        %679 = vmatpush2.msra.mxu0 0.0
        %680 = vmatprep.subr.mxu0 0.0
        %681 = vmatpush2.msra.mxu0 0.0
        %682 = vmatprep.subr.mxu0 0.0
        %683 = vmatpush2.msra.mxu0 0.0
        %684 = vmatprep.mubr.f32.mxu0 0.0
        %685 = vmatmul.mubr.f32.gmra.mxu0 %v618
        %v686 = vpop.f32.mrf.mxu0
        %v687 = vadd.f32 0.0, %v686
        %v688 = vpop.f32.mrf.mxu0
        %689 = vdwg.mxu0
        %690 = vrot.lane.b32.xlu0 %v380, 96
        %v691 = vpop.permute.xlu0 %690
        %692 = vrot.lane.b32.xlu0 %v452, 96
        %v693 = vpop.permute.xlu0 %692
        %v694 = vsel %vm306, %v691, 0
        %v696 = vsel %vm306, %v693, 0
        %698 = vmatprep.subr.mxu0 0.0
        %699 = vmatpush1.xpose.msra.mxu0 0.0
        %700 = vmatprep.subr.mxu0 0.0
        %701 = vmatpush1.xpose.msra.mxu0 0.0
        %702 = vmatprep.subr.mxu0 0.0
        %703 = vmatpush1.xpose.msra.mxu0 0.0
        %704 = vmatprep.subr.mxu0 0.0
        %705 = vmatpush1.xpose.msra.mxu0 0.0
        %706 = vmatprep.subr.mxu0 0.0
        %707 = vmatpush1.xpose.msra.mxu0 0.0
        %708 = vmatprep.subr.mxu0 0.0
        %709 = vmatpush1.xpose.msra.mxu0 0.0
        %710 = vmatprep.subr.mxu0 0.0
        %711 = vmatpush1.xpose.msra.mxu0 0.0
        %712 = vmatprep.subr.mxu0 0.0
        %713 = vmatpush1.xpose.msra.mxu0 0.0
        %714 = vmatprep.subr.mxu0 0.0
        %715 = vmatpush1.xpose.msra.mxu0 0.0
        %716 = vmatprep.subr.mxu0 0.0
        %717 = vmatpush1.xpose.msra.mxu0 0.0
        %718 = vmatprep.subr.mxu0 0.0
        %719 = vmatpush1.xpose.msra.mxu0 0.0
        %720 = vmatprep.subr.mxu0 0.0
        %721 = vmatpush1.xpose.msra.mxu0 0.0
        %722 = vmatprep.subr.mxu0 0.0
        %723 = vmatpush1.xpose.msra.mxu0 0.0
        %724 = vmatprep.subr.mxu0 0.0
        %725 = vmatpush1.xpose.msra.mxu0 0.0
        %726 = vmatprep.subr.mxu0 0.0
        %727 = vmatpush1.xpose.msra.mxu0 0.0
        %728 = vmatprep.subr.mxu0 0.0
        %729 = vmatpush1.xpose.msra.mxu0 %v696
        %730 = vmatprep.subr.mxu0 0.0
        %731 = vmatpush2.xpose.msra.mxu0 0.0
        %732 = vmatprep.subr.mxu0 0.0
        %733 = vmatpush2.xpose.msra.mxu0 0.0
        %734 = vmatprep.subr.mxu0 0.0
        %735 = vmatpush2.xpose.msra.mxu0 0.0
        %736 = vmatprep.subr.mxu0 0.0
        %737 = vmatpush2.xpose.msra.mxu0 0.0
        %738 = vmatprep.subr.mxu0 0.0
        %739 = vmatpush2.xpose.msra.mxu0 0.0
        %740 = vmatprep.subr.mxu0 0.0
        %741 = vmatpush2.xpose.msra.mxu0 0.0
        %742 = vmatprep.subr.mxu0 0.0
        %743 = vmatpush2.xpose.msra.mxu0 0.0
        %744 = vmatprep.subr.mxu0 0.0
        %745 = vmatpush2.xpose.msra.mxu0 0.0
        %746 = vmatprep.subr.mxu0 0.0
        %747 = vmatpush2.xpose.msra.mxu0 0.0
        %748 = vmatprep.subr.mxu0 0.0
        %749 = vmatpush2.xpose.msra.mxu0 0.0
        %750 = vmatprep.subr.mxu0 0.0
        %751 = vmatpush2.xpose.msra.mxu0 0.0
        %752 = vmatprep.subr.mxu0 0.0
        %753 = vmatpush2.xpose.msra.mxu0 0.0
        %754 = vmatprep.subr.mxu0 0.0
        %755 = vmatpush2.xpose.msra.mxu0 0.0
        %756 = vmatprep.subr.mxu0 0.0
        %757 = vmatpush2.xpose.msra.mxu0 0.0
        %758 = vmatprep.subr.mxu0 0.0
        %759 = vmatpush2.xpose.msra.mxu0 0.0
        %760 = vmatprep.subr.mxu0 0.0
        %761 = vmatpush2.xpose.msra.mxu0 0.0
        %762 = vmatprep.mubr.f32.mxu0 0.0
        %763 = vmatmul.mubr.f32.gmra.mxu0 %v694
        %v764 = vpop.f32.mrf.mxu0
        %v765 = vadd.f32 0.0, %v764
        %v766 = vpop.f32.mrf.mxu0
        %767 = vdwg.mxu0
        %v768 = vsel %vm605, %v765, -inf
        %769 = vmax.xlane.f32.xlu0 %v768
        %v770 = vpop.xlane.xlu0 %769
        %v771 = vsub.f32 %v765, %v770
        %v772 = vmul.f32 %v771, 1.442695
        %v773 = vpow.pop %v772
        %v774 = vsel %vm605, %v773, 0.0
        %775 = vadd.xlane.f32.xlu0 %v774
        %v776 = vpop.xlane.xlu0 %775
        %v777 = vrcp.pop %v776
        %v778 = vmul.f32 %v773, %v777
        %780 = vrot.lane.b32.xlu0 %v526, 96
        %v781 = vpop.permute.xlu0 %780
        %v784 = vsel %vm605, %v778, 0
        %786 = vmatprep.subr.mxu0 0.0
        %787 = vmatpush1.msra.mxu0 0.0
        %788 = vmatprep.subr.mxu0 0.0
        %789 = vmatpush1.msra.mxu0 0.0
        %790 = vmatprep.subr.mxu0 0.0
        %791 = vmatpush1.msra.mxu0 0.0
        %792 = vmatprep.subr.mxu0 0.0
        %793 = vmatpush1.msra.mxu0 0.0
        %794 = vmatprep.subr.mxu0 0.0
        %795 = vmatpush1.msra.mxu0 0.0
        %796 = vmatprep.subr.mxu0 0.0
        %797 = vmatpush1.msra.mxu0 0.0
        %798 = vmatprep.subr.mxu0 0.0
        %799 = vmatpush1.msra.mxu0 0.0
        %800 = vmatprep.subr.mxu0 0.0
        %801 = vmatpush1.msra.mxu0 0.0
        %802 = vmatprep.subr.mxu0 0.0
        %803 = vmatpush1.msra.mxu0 0.0
        %804 = vmatprep.subr.mxu0 0.0
        %805 = vmatpush1.msra.mxu0 0.0
        %806 = vmatprep.subr.mxu0 0.0
        %807 = vmatpush1.msra.mxu0 0.0
        %808 = vmatprep.subr.mxu0 0.0
        %809 = vmatpush1.msra.mxu0 0.0
        %810 = vmatprep.subr.mxu0 0.0
        %811 = vmatpush1.msra.mxu0 0.0
        %812 = vmatprep.subr.mxu0 0.0
        %813 = vmatpush1.msra.mxu0 0.0
        %814 = vmatprep.subr.mxu0 0.0
        %815 = vmatpush1.msra.mxu0 0.0
        %816 = vmatprep.subr.mxu0 0.0
        %817 = vmatpush1.msra.mxu0 %v781
        %818 = vmatprep.subr.mxu0 0.0
        %819 = vmatpush2.msra.mxu0 0.0
        %820 = vmatprep.subr.mxu0 0.0
        %821 = vmatpush2.msra.mxu0 0.0
        %822 = vmatprep.subr.mxu0 0.0
        %823 = vmatpush2.msra.mxu0 0.0
        %824 = vmatprep.subr.mxu0 0.0
        %825 = vmatpush2.msra.mxu0 0.0
        %826 = vmatprep.subr.mxu0 0.0
        %827 = vmatpush2.msra.mxu0 0.0
        %828 = vmatprep.subr.mxu0 0.0
        %829 = vmatpush2.msra.mxu0 0.0
        %830 = vmatprep.subr.mxu0 0.0
        %831 = vmatpush2.msra.mxu0 0.0
        %832 = vmatprep.subr.mxu0 0.0
        %833 = vmatpush2.msra.mxu0 0.0
        %834 = vmatprep.subr.mxu0 0.0
        %835 = vmatpush2.msra.mxu0 0.0
        %836 = vmatprep.subr.mxu0 0.0
        %837 = vmatpush2.msra.mxu0 0.0
        %838 = vmatprep.subr.mxu0 0.0
        %839 = vmatpush2.msra.mxu0 0.0
        %840 = vmatprep.subr.mxu0 0.0
        %841 = vmatpush2.msra.mxu0 0.0
        %842 = vmatprep.subr.mxu0 0.0
        %843 = vmatpush2.msra.mxu0 0.0
        %844 = vmatprep.subr.mxu0 0.0
        %845 = vmatpush2.msra.mxu0 0.0
        %846 = vmatprep.subr.mxu0 0.0
        %847 = vmatpush2.msra.mxu0 0.0
        %848 = vmatprep.subr.mxu0 0.0
        %849 = vmatpush2.msra.mxu0 0.0
        %850 = vmatprep.mubr.f32.mxu0 0.0
        %851 = vmatmul.mubr.f32.gmra.mxu0 %v784
        %v852 = vpop.f32.mrf.mxu0
        %v853 = vadd.f32 0.0, %v852
        %v854 = vpop.f32.mrf.mxu0
        %855 = vdwg.mxu0
        %856 = vrot.lane.b32.xlu0 %v380, 64
        %v857 = vpop.permute.xlu0 %856
        %858 = vrot.lane.b32.xlu0 %v452, 64
        %v859 = vpop.permute.xlu0 %858
        %v860 = vsel %vm306, %v857, 0
        %v862 = vsel %vm306, %v859, 0
        %864 = vmatprep.subr.mxu0 0.0
        %865 = vmatpush1.xpose.msra.mxu0 0.0
        %866 = vmatprep.subr.mxu0 0.0
        %867 = vmatpush1.xpose.msra.mxu0 0.0
        %868 = vmatprep.subr.mxu0 0.0
        %869 = vmatpush1.xpose.msra.mxu0 0.0
        %870 = vmatprep.subr.mxu0 0.0
        %871 = vmatpush1.xpose.msra.mxu0 0.0
        %872 = vmatprep.subr.mxu0 0.0
        %873 = vmatpush1.xpose.msra.mxu0 0.0
        %874 = vmatprep.subr.mxu0 0.0
        %875 = vmatpush1.xpose.msra.mxu0 0.0
        %876 = vmatprep.subr.mxu0 0.0
        %877 = vmatpush1.xpose.msra.mxu0 0.0
        %878 = vmatprep.subr.mxu0 0.0
        %879 = vmatpush1.xpose.msra.mxu0 0.0
        %880 = vmatprep.subr.mxu0 0.0
        %881 = vmatpush1.xpose.msra.mxu0 0.0
        %882 = vmatprep.subr.mxu0 0.0
        %883 = vmatpush1.xpose.msra.mxu0 0.0
        %884 = vmatprep.subr.mxu0 0.0
        %885 = vmatpush1.xpose.msra.mxu0 0.0
        %886 = vmatprep.subr.mxu0 0.0
        %887 = vmatpush1.xpose.msra.mxu0 0.0
        %888 = vmatprep.subr.mxu0 0.0
        %889 = vmatpush1.xpose.msra.mxu0 0.0
        %890 = vmatprep.subr.mxu0 0.0
        %891 = vmatpush1.xpose.msra.mxu0 0.0
        %892 = vmatprep.subr.mxu0 0.0
        %893 = vmatpush1.xpose.msra.mxu0 0.0
        %894 = vmatprep.subr.mxu0 0.0
        %895 = vmatpush1.xpose.msra.mxu0 %v862
        %896 = vmatprep.subr.mxu0 0.0
        %897 = vmatpush2.xpose.msra.mxu0 0.0
        %898 = vmatprep.subr.mxu0 0.0
        %899 = vmatpush2.xpose.msra.mxu0 0.0
        %900 = vmatprep.subr.mxu0 0.0
        %901 = vmatpush2.xpose.msra.mxu0 0.0
        %902 = vmatprep.subr.mxu0 0.0
        %903 = vmatpush2.xpose.msra.mxu0 0.0
        %904 = vmatprep.subr.mxu0 0.0
        %905 = vmatpush2.xpose.msra.mxu0 0.0
        %906 = vmatprep.subr.mxu0 0.0
        %907 = vmatpush2.xpose.msra.mxu0 0.0
        %908 = vmatprep.subr.mxu0 0.0
        %909 = vmatpush2.xpose.msra.mxu0 0.0
        %910 = vmatprep.subr.mxu0 0.0
        %911 = vmatpush2.xpose.msra.mxu0 0.0
        %912 = vmatprep.subr.mxu0 0.0
        %913 = vmatpush2.xpose.msra.mxu0 0.0
        %914 = vmatprep.subr.mxu0 0.0
        %915 = vmatpush2.xpose.msra.mxu0 0.0
        %916 = vmatprep.subr.mxu0 0.0
        %917 = vmatpush2.xpose.msra.mxu0 0.0
        %918 = vmatprep.subr.mxu0 0.0
        %919 = vmatpush2.xpose.msra.mxu0 0.0
        %920 = vmatprep.subr.mxu0 0.0
        %921 = vmatpush2.xpose.msra.mxu0 0.0
        %922 = vmatprep.subr.mxu0 0.0
        %923 = vmatpush2.xpose.msra.mxu0 0.0
        %924 = vmatprep.subr.mxu0 0.0
        %925 = vmatpush2.xpose.msra.mxu0 0.0
        %926 = vmatprep.subr.mxu0 0.0
        %927 = vmatpush2.xpose.msra.mxu0 0.0
        %928 = vmatprep.mubr.f32.mxu0 0.0
        %929 = vmatmul.mubr.f32.gmra.mxu0 %v860
        %v930 = vpop.f32.mrf.mxu0
        %v931 = vadd.f32 0.0, %v930
        %v932 = vpop.f32.mrf.mxu0
        %933 = vdwg.mxu0
        %v934 = vsel %vm605, %v931, -inf
        %935 = vmax.xlane.f32.xlu0 %v934
        %v936 = vpop.xlane.xlu0 %935
        %v937 = vsub.f32 %v931, %v936
        %v938 = vmul.f32 %v937, 1.442695
        %v939 = vpow.pop %v938
        %v940 = vsel %vm605, %v939, 0.0
        %941 = vadd.xlane.f32.xlu0 %v940
        %v942 = vpop.xlane.xlu0 %941
        %v943 = vrcp.pop %v942
        %v944 = vmul.f32 %v939, %v943
        %945 = vrot.lane.b32.xlu0 %v526, 64
        %v946 = vpop.permute.xlu0 %945
        %v949 = vsel %vm605, %v944, 0
        %951 = vmatprep.subr.mxu0 0.0
        %952 = vmatpush1.msra.mxu0 0.0
        %953 = vmatprep.subr.mxu0 0.0
        %954 = vmatpush1.msra.mxu0 0.0
        %955 = vmatprep.subr.mxu0 0.0
        %956 = vmatpush1.msra.mxu0 0.0
        %957 = vmatprep.subr.mxu0 0.0
        %958 = vmatpush1.msra.mxu0 0.0
        %959 = vmatprep.subr.mxu0 0.0
        %960 = vmatpush1.msra.mxu0 0.0
        %961 = vmatprep.subr.mxu0 0.0
        %962 = vmatpush1.msra.mxu0 0.0
        %963 = vmatprep.subr.mxu0 0.0
        %964 = vmatpush1.msra.mxu0 0.0
        %965 = vmatprep.subr.mxu0 0.0
        %966 = vmatpush1.msra.mxu0 0.0
        %967 = vmatprep.subr.mxu0 0.0
        %968 = vmatpush1.msra.mxu0 0.0
        %969 = vmatprep.subr.mxu0 0.0
        %970 = vmatpush1.msra.mxu0 0.0
        %971 = vmatprep.subr.mxu0 0.0
        %972 = vmatpush1.msra.mxu0 0.0
        %973 = vmatprep.subr.mxu0 0.0
        %974 = vmatpush1.msra.mxu0 0.0
        %975 = vmatprep.subr.mxu0 0.0
        %976 = vmatpush1.msra.mxu0 0.0
        %977 = vmatprep.subr.mxu0 0.0
        %978 = vmatpush1.msra.mxu0 0.0
        %979 = vmatprep.subr.mxu0 0.0
        %980 = vmatpush1.msra.mxu0 0.0
        %981 = vmatprep.subr.mxu0 0.0
        %982 = vmatpush1.msra.mxu0 %v946
        %983 = vmatprep.subr.mxu0 0.0
        %984 = vmatpush2.msra.mxu0 0.0
        %985 = vmatprep.subr.mxu0 0.0
        %986 = vmatpush2.msra.mxu0 0.0
        %987 = vmatprep.subr.mxu0 0.0
        %988 = vmatpush2.msra.mxu0 0.0
        %989 = vmatprep.subr.mxu0 0.0
        %990 = vmatpush2.msra.mxu0 0.0
        %991 = vmatprep.subr.mxu0 0.0
        %992 = vmatpush2.msra.mxu0 0.0
        %993 = vmatprep.subr.mxu0 0.0
        %994 = vmatpush2.msra.mxu0 0.0
        %995 = vmatprep.subr.mxu0 0.0
        %996 = vmatpush2.msra.mxu0 0.0
        %997 = vmatprep.subr.mxu0 0.0
        %998 = vmatpush2.msra.mxu0 0.0
        %999 = vmatprep.subr.mxu0 0.0
        %1000 = vmatpush2.msra.mxu0 0.0
        %1001 = vmatprep.subr.mxu0 0.0
        %1002 = vmatpush2.msra.mxu0 0.0
        %1003 = vmatprep.subr.mxu0 0.0
        %1004 = vmatpush2.msra.mxu0 0.0
        %1005 = vmatprep.subr.mxu0 0.0
        %1006 = vmatpush2.msra.mxu0 0.0
        %1007 = vmatprep.subr.mxu0 0.0
        %1008 = vmatpush2.msra.mxu0 0.0
        %1009 = vmatprep.subr.mxu0 0.0
        %1010 = vmatpush2.msra.mxu0 0.0
        %1011 = vmatprep.subr.mxu0 0.0
        %1012 = vmatpush2.msra.mxu0 0.0
        %1013 = vmatprep.subr.mxu0 0.0
        %1014 = vmatpush2.msra.mxu0 0.0
        %1015 = vmatprep.mubr.f32.mxu0 0.0
        %1016 = vmatmul.mubr.f32.gmra.mxu0 %v949
        %v1017 = vpop.f32.mrf.mxu0
        %v1018 = vadd.f32 0.0, %v1017
        %v1019 = vpop.f32.mrf.mxu0
        %1020 = vdwg.mxu0
        %1021 = vrot.lane.b32.xlu0 %v380, 32
        %v1022 = vpop.permute.xlu0 %1021
        %1023 = vrot.lane.b32.xlu0 %v452, 32
        %v1024 = vpop.permute.xlu0 %1023
        %v1025 = vsel %vm306, %v1022, 0
        %v1027 = vsel %vm306, %v1024, 0
        %1029 = vmatprep.subr.mxu0 0.0
        %1030 = vmatpush1.xpose.msra.mxu0 0.0
        %1031 = vmatprep.subr.mxu0 0.0
        %1032 = vmatpush1.xpose.msra.mxu0 0.0
        %1033 = vmatprep.subr.mxu0 0.0
        %1034 = vmatpush1.xpose.msra.mxu0 0.0
        %1035 = vmatprep.subr.mxu0 0.0
        %1036 = vmatpush1.xpose.msra.mxu0 0.0
        %1037 = vmatprep.subr.mxu0 0.0
        %1038 = vmatpush1.xpose.msra.mxu0 0.0
        %1039 = vmatprep.subr.mxu0 0.0
        %1040 = vmatpush1.xpose.msra.mxu0 0.0
        %1041 = vmatprep.subr.mxu0 0.0
        %1042 = vmatpush1.xpose.msra.mxu0 0.0
        %1043 = vmatprep.subr.mxu0 0.0
        %1044 = vmatpush1.xpose.msra.mxu0 0.0
        %1045 = vmatprep.subr.mxu0 0.0
        %1046 = vmatpush1.xpose.msra.mxu0 0.0
        %1047 = vmatprep.subr.mxu0 0.0
        %1048 = vmatpush1.xpose.msra.mxu0 0.0
        %1049 = vmatprep.subr.mxu0 0.0
        %1050 = vmatpush1.xpose.msra.mxu0 0.0
        %1051 = vmatprep.subr.mxu0 0.0
        %1052 = vmatpush1.xpose.msra.mxu0 0.0
        %1053 = vmatprep.subr.mxu0 0.0
        %1054 = vmatpush1.xpose.msra.mxu0 0.0
        %1055 = vmatprep.subr.mxu0 0.0
        %1056 = vmatpush1.xpose.msra.mxu0 0.0
        %1057 = vmatprep.subr.mxu0 0.0
        %1058 = vmatpush1.xpose.msra.mxu0 0.0
        %1059 = vmatprep.subr.mxu0 0.0
        %1060 = vmatpush1.xpose.msra.mxu0 %v1027
        %1061 = vmatprep.subr.mxu0 0.0
        %1062 = vmatpush2.xpose.msra.mxu0 0.0
        %1063 = vmatprep.subr.mxu0 0.0
        %1064 = vmatpush2.xpose.msra.mxu0 0.0
        %1065 = vmatprep.subr.mxu0 0.0
        %1066 = vmatpush2.xpose.msra.mxu0 0.0
        %1067 = vmatprep.subr.mxu0 0.0
        %1068 = vmatpush2.xpose.msra.mxu0 0.0
        %1069 = vmatprep.subr.mxu0 0.0
        %1070 = vmatpush2.xpose.msra.mxu0 0.0
        %1071 = vmatprep.subr.mxu0 0.0
        %1072 = vmatpush2.xpose.msra.mxu0 0.0
        %1073 = vmatprep.subr.mxu0 0.0
        %1074 = vmatpush2.xpose.msra.mxu0 0.0
        %1075 = vmatprep.subr.mxu0 0.0
        %1076 = vmatpush2.xpose.msra.mxu0 0.0
        %1077 = vmatprep.subr.mxu0 0.0
        %1078 = vmatpush2.xpose.msra.mxu0 0.0
        %1079 = vmatprep.subr.mxu0 0.0
        %1080 = vmatpush2.xpose.msra.mxu0 0.0
        %1081 = vmatprep.subr.mxu0 0.0
        %1082 = vmatpush2.xpose.msra.mxu0 0.0
        %1083 = vmatprep.subr.mxu0 0.0
        %1084 = vmatpush2.xpose.msra.mxu0 0.0
        %1085 = vmatprep.subr.mxu0 0.0
        %1086 = vmatpush2.xpose.msra.mxu0 0.0
        %1087 = vmatprep.subr.mxu0 0.0
        %1088 = vmatpush2.xpose.msra.mxu0 0.0
        %1089 = vmatprep.subr.mxu0 0.0
        %1090 = vmatpush2.xpose.msra.mxu0 0.0
        %1091 = vmatprep.subr.mxu0 0.0
        %1092 = vmatpush2.xpose.msra.mxu0 0.0
        %1093 = vmatprep.mubr.f32.mxu0 0.0
        %1094 = vmatmul.mubr.f32.gmra.mxu0 %v1025
        %v1095 = vpop.f32.mrf.mxu0
        %v1096 = vadd.f32 0.0, %v1095
        %v1097 = vpop.f32.mrf.mxu0
        %1098 = vdwg.mxu0
        %v1099 = vsel %vm605, %v1096, -inf
        %1100 = vmax.xlane.f32.xlu0 %v1099
        %v1101 = vpop.xlane.xlu0 %1100
        %v1102 = vsub.f32 %v1096, %v1101
        %v1103 = vmul.f32 %v1102, 1.442695
        %v1104 = vpow.pop %v1103
        %v1105 = vsel %vm605, %v1104, 0.0
        %1106 = vadd.xlane.f32.xlu0 %v1105
        %v1107 = vpop.xlane.xlu0 %1106
        %v1108 = vrcp.pop %v1107
        %v1109 = vmul.f32 %v1104, %v1108
        %1110 = vrot.lane.b32.xlu0 %v526, 32
        %v1111 = vpop.permute.xlu0 %1110
        %v1114 = vsel %vm605, %v1109, 0
        %1116 = vmatprep.subr.mxu0 0.0
        %1117 = vmatpush1.msra.mxu0 0.0
        %1118 = vmatprep.subr.mxu0 0.0
        %1119 = vmatpush1.msra.mxu0 0.0
        %1120 = vmatprep.subr.mxu0 0.0
        %1121 = vmatpush1.msra.mxu0 0.0
        %1122 = vmatprep.subr.mxu0 0.0
        %1123 = vmatpush1.msra.mxu0 0.0
        %1124 = vmatprep.subr.mxu0 0.0
        %1125 = vmatpush1.msra.mxu0 0.0
        %1126 = vmatprep.subr.mxu0 0.0
        %1127 = vmatpush1.msra.mxu0 0.0
        %1128 = vmatprep.subr.mxu0 0.0
        %1129 = vmatpush1.msra.mxu0 0.0
        %1130 = vmatprep.subr.mxu0 0.0
        %1131 = vmatpush1.msra.mxu0 0.0
        %1132 = vmatprep.subr.mxu0 0.0
        %1133 = vmatpush1.msra.mxu0 0.0
        %1134 = vmatprep.subr.mxu0 0.0
        %1135 = vmatpush1.msra.mxu0 0.0
        %1136 = vmatprep.subr.mxu0 0.0
        %1137 = vmatpush1.msra.mxu0 0.0
        %1138 = vmatprep.subr.mxu0 0.0
        %1139 = vmatpush1.msra.mxu0 0.0
        %1140 = vmatprep.subr.mxu0 0.0
        %1141 = vmatpush1.msra.mxu0 0.0
        %1142 = vmatprep.subr.mxu0 0.0
        %1143 = vmatpush1.msra.mxu0 0.0
        %1144 = vmatprep.subr.mxu0 0.0
        %1145 = vmatpush1.msra.mxu0 0.0
        %1146 = vmatprep.subr.mxu0 0.0
        %1147 = vmatpush1.msra.mxu0 %v1111
        %1148 = vmatprep.subr.mxu0 0.0
        %1149 = vmatpush2.msra.mxu0 0.0
        %1150 = vmatprep.subr.mxu0 0.0
        %1151 = vmatpush2.msra.mxu0 0.0
        %1152 = vmatprep.subr.mxu0 0.0
        %1153 = vmatpush2.msra.mxu0 0.0
        %1154 = vmatprep.subr.mxu0 0.0
        %1155 = vmatpush2.msra.mxu0 0.0
        %1156 = vmatprep.subr.mxu0 0.0
        %1157 = vmatpush2.msra.mxu0 0.0
        %1158 = vmatprep.subr.mxu0 0.0
        %1159 = vmatpush2.msra.mxu0 0.0
        %1160 = vmatprep.subr.mxu0 0.0
        %1161 = vmatpush2.msra.mxu0 0.0
        %1162 = vmatprep.subr.mxu0 0.0
        %1163 = vmatpush2.msra.mxu0 0.0
        %1164 = vmatprep.subr.mxu0 0.0
        %1165 = vmatpush2.msra.mxu0 0.0
        %1166 = vmatprep.subr.mxu0 0.0
        %1167 = vmatpush2.msra.mxu0 0.0
        %1168 = vmatprep.subr.mxu0 0.0
        %1169 = vmatpush2.msra.mxu0 0.0
        %1170 = vmatprep.subr.mxu0 0.0
        %1171 = vmatpush2.msra.mxu0 0.0
        %1172 = vmatprep.subr.mxu0 0.0
        %1173 = vmatpush2.msra.mxu0 0.0
        %1174 = vmatprep.subr.mxu0 0.0
        %1175 = vmatpush2.msra.mxu0 0.0
        %1176 = vmatprep.subr.mxu0 0.0
        %1177 = vmatpush2.msra.mxu0 0.0
        %1178 = vmatprep.subr.mxu0 0.0
        %1179 = vmatpush2.msra.mxu0 0.0
        %1180 = vmatprep.mubr.f32.mxu0 0.0
        %1181 = vmatmul.mubr.f32.gmra.mxu0 %v1114
        %v1182 = vpop.f32.mrf.mxu0
        %v1183 = vadd.f32 0.0, %v1182
        %v1184 = vpop.f32.mrf.mxu0
        %1185 = vdwg.mxu0
        %1187 = vrot.lane.b32.xlu0 %v853, 32
        %v1188 = vpop.permute.xlu0 %1187
        %1191 = vrot.lane.b32.xlu0 %v1018, 64
        %v1192 = vpop.permute.xlu0 %1191
        %1195 = vrot.lane.b32.xlu0 %v1183, 96
        %v1196 = vpop.permute.xlu0 %1195
        %v1198 = vsel %vm306, %v687, %v1188
        %vm1199 = vcmask 523264
        %v1200 = vsel %vm1199, %v1198, %v1192
        %vm1201 = vcmask 785408
        %v1202 = vsel %vm1201, %v1200, %v1196
        %v1203 = vld [vmem:[%s4] sm:$0xff]
        %v1204 = vld [vmem:[%s4 + $0x8] sm:$0xff]
        %v1205 = vld [vmem:[%s4 + $0x10] sm:$0xff]
        %v1206 = vld [vmem:[%s4 + $0x18] sm:$0xff]
        %v1207 = vld [vmem:[%s4 + $0x20] sm:$0xff]
        %v1208 = vld [vmem:[%s4 + $0x28] sm:$0xff]
        %v1209 = vld [vmem:[%s4 + $0x30] sm:$0xff]
        %v1210 = vld [vmem:[%s4 + $0x38] sm:$0xff]
        %v1211 = vld [vmem:[%s4 + $0x40] sm:$0xff]
        %v1212 = vld [vmem:[%s4 + $0x48] sm:$0xff]
        %v1213 = vld [vmem:[%s4 + $0x50] sm:$0xff]
        %v1214 = vld [vmem:[%s4 + $0x58] sm:$0xff]
        %v1215 = vld [vmem:[%s4 + $0x60] sm:$0xff]
        %v1216 = vld [vmem:[%s4 + $0x68] sm:$0xff]
        %v1217 = vld [vmem:[%s4 + $0x70] sm:$0xff]
        %v1218 = vld [vmem:[%s4 + $0x78] sm:$0xff]
        %v1219 = vld [vmem:[%s5] sm:$0x1]
        %v1221 = vlaneseq
        %v1222 = vshrl.u32 %v1221, 7
        %v1223 = vsub.s32 0, %v1222
        %v1224 = vrot.slane %v1219, %v1223
        %1226 = vmatprep.subr.mxu0 0.0
        %1227 = vmatpush1.msra.mxu0 %v1218
        %1228 = vmatprep.subr.mxu0 0.0
        %1229 = vmatpush1.msra.mxu0 %v1217
        %1230 = vmatprep.subr.mxu0 0.0
        %1231 = vmatpush1.msra.mxu0 %v1216
        %1232 = vmatprep.subr.mxu0 0.0
        %1233 = vmatpush1.msra.mxu0 %v1215
        %1234 = vmatprep.subr.mxu0 0.0
        %1235 = vmatpush1.msra.mxu0 %v1214
        %1236 = vmatprep.subr.mxu0 0.0
        %1237 = vmatpush1.msra.mxu0 %v1213
        %1238 = vmatprep.subr.mxu0 0.0
        %1239 = vmatpush1.msra.mxu0 %v1212
        %1240 = vmatprep.subr.mxu0 0.0
        %1241 = vmatpush1.msra.mxu0 %v1211
        %1242 = vmatprep.subr.mxu0 0.0
        %1243 = vmatpush1.msra.mxu0 %v1210
        %1244 = vmatprep.subr.mxu0 0.0
        %1245 = vmatpush1.msra.mxu0 %v1209
        %1246 = vmatprep.subr.mxu0 0.0
        %1247 = vmatpush1.msra.mxu0 %v1208
        %1248 = vmatprep.subr.mxu0 0.0
        %1249 = vmatpush1.msra.mxu0 %v1207
        %1250 = vmatprep.subr.mxu0 0.0
        %1251 = vmatpush1.msra.mxu0 %v1206
        %1252 = vmatprep.subr.mxu0 0.0
        %1253 = vmatpush1.msra.mxu0 %v1205
        %1254 = vmatprep.subr.mxu0 0.0
        %1255 = vmatpush1.msra.mxu0 %v1204
        %1256 = vmatprep.subr.mxu0 0.0
        %1257 = vmatpush1.msra.mxu0 %v1203
        %1258 = vmatprep.subr.mxu0 0.0
        %1259 = vmatpush2.msra.mxu0 0.0
        %1260 = vmatprep.subr.mxu0 0.0
        %1261 = vmatpush2.msra.mxu0 0.0
        %1262 = vmatprep.subr.mxu0 0.0
        %1263 = vmatpush2.msra.mxu0 0.0
        %1264 = vmatprep.subr.mxu0 0.0
        %1265 = vmatpush2.msra.mxu0 0.0
        %1266 = vmatprep.subr.mxu0 0.0
        %1267 = vmatpush2.msra.mxu0 0.0
        %1268 = vmatprep.subr.mxu0 0.0
        %1269 = vmatpush2.msra.mxu0 0.0
        %1270 = vmatprep.subr.mxu0 0.0
        %1271 = vmatpush2.msra.mxu0 0.0
        %1272 = vmatprep.subr.mxu0 0.0
        %1273 = vmatpush2.msra.mxu0 0.0
        %1274 = vmatprep.subr.mxu0 0.0
        %1275 = vmatpush2.msra.mxu0 0.0
        %1276 = vmatprep.subr.mxu0 0.0
        %1277 = vmatpush2.msra.mxu0 0.0
        %1278 = vmatprep.subr.mxu0 0.0
        %1279 = vmatpush2.msra.mxu0 0.0
        %1280 = vmatprep.subr.mxu0 0.0
        %1281 = vmatpush2.msra.mxu0 0.0
        %1282 = vmatprep.subr.mxu0 0.0
        %1283 = vmatpush2.msra.mxu0 0.0
        %1284 = vmatprep.subr.mxu0 0.0
        %1285 = vmatpush2.msra.mxu0 0.0
        %1286 = vmatprep.subr.mxu0 0.0
        %1287 = vmatpush2.msra.mxu0 0.0
        %1288 = vmatprep.subr.mxu0 0.0
        %1289 = vmatpush2.msra.mxu0 0.0
        %1290 = vmatprep.mubr.f32.mxu0 0.0
        %1291 = vmatmul.mubr.f32.gmra.mxu0 %v1202
        %v1292 = vpop.f32.mrf.mxu0
        %v1293 = vadd.f32 %v1224, %v1292
        %v1294 = vpop.f32.mrf.mxu0
        %1295 = vdwg.mxu0
        %v1296 = vadd.f32 %v1293, %v301
        %v1297 = vsel %vm306, %v1296, 0.0
        %1298 = vadd.xlane.f32.xlu0 %v1297
        %v1299 = vpop.xlane.xlu0 %1298
        %v1300 = vrcp.pop 32.0
        %v1301 = vmul.f32 %v1299, %v1300
        %v1302 = vsub.f32 %v1296, %v1301
        %v1303 = vmul.f32 %v1302, %v1302
        %v1304 = vsel %vm306, %v1303, 0.0
        %1305 = vadd.xlane.f32.xlu0 %v1304
        %v1306 = vpop.xlane.xlu0 %1305
        %v1307 = vrcp.pop 31.0
        %v1308 = vmul.f32 %v1306, %v1307
        %v1309 = vrsqrt.pop %v1308
        %v1310 = vmul.f32 %v1308, %v1309
        %vm1311 = vcmp.eq.f32.partialorder %v1308, inf
        %v1312 = vsel %vm1311, %v1308, %v1310
        %vm1313 = vcmp.eq.f32.partialorder %v1308, 0.0
        %v1314 = vand.u32 %v1308, 2147483648
        %v1315 = vsel %vm1313, %v1314, %v1312
        %v1316 = vadd.f32 %v1315, 0.001
        %v1317 = vrcp.pop %v1316
        %v1318 = vmul.f32 %v1302, %v1317
        %v1319 = vld [vmem:[%s6] sm:$0x1]
        %v1321 = vlaneseq
        %v1322 = vshrl.u32 %v1321, 7
        %v1323 = vsub.s32 0, %v1322
        %v1324 = vrot.slane %v1319, %v1323
        %v1326 = vmul.f32 %v1318, %v1324
        %v1327 = vld [vmem:[%s7] sm:$0x1]
        %v1329 = vlaneseq
        %v1330 = vshrl.u32 %v1329, 7
        %v1331 = vsub.s32 0, %v1330
        %v1332 = vrot.slane %v1327, %v1331
        %v1334 = vadd.f32 %v1326, %v1332
        %1335 = vst.msk [vmem:[%s296] sm:$0xff] %vm306, %v1334
        %s1336 = sand.u32 %s203, 1
        %s1337 = scalar_lea.sflag [#allocation3], %s1336
        %s1338 = sand.u32 %s203, 1
        %s1339 = smul.addr %s1338, 8
        %s1340 = scalar_lea.vmem [#allocation2], %s1339
        // Predicated region
        $region53: #{tpu_custom_call.1} parent=51 // pred_check
          %p1341 = pneg %p213
        $region54: #{tpu_custom_call.1} parent=51 // pred_check_branch
          %1343 = sbr.rel (%p1341) target = $region56
        $region55: #{tpu_custom_call.1} parent=51 // pred_region
          %s1345 = ssub.s32 128, 128
          %1346 = vsyncadd %s1337, %s1345
          %s1347 = smul.addr %s22, 128
          %s1348 = scalar_lea.hbm %s8, %s1347
          %s1350 = sshll.u32 %s1340, 4
          %s1351 = int_to_ptr.vmem [resolvable:$true] %s1350
          %1353 = dma.vmem_to_hbm [thread:$0]  %s1351, 128, %s1348, %s1337
        $region56: #{tpu_custom_call.1} parent=51 // pred_fallthru
          _
      $region52: #{tpu_custom_call.1} parent=5 // pred_fallthru
        _
      %p1354 = scmp.le.s32.totalorder 2, %s17
      // Predicated region
      $region57: #{tpu_custom_call.1} parent=5 // pred_check
        %p1355 = pneg %p1354
      $region58: #{tpu_custom_call.1} parent=5 // pred_check_branch
        %1357 = sbr.rel (%p1355) target = $region60
      $region59: #{tpu_custom_call.1} parent=5 // pred_region
        %s1358 = ssub.s32 %s17, 2
        // Predicated region
        $region61: #{tpu_custom_call.1} parent=59 // pred_check
          %p1359 = pneg %p219
        $region62: #{tpu_custom_call.1} parent=59 // pred_check_branch
          %1361 = sbr.rel (%p1359) target = $region64
        $region63: #{tpu_custom_call.1} parent=59 // pred_region
          %s1362 = sand.u32 %s204, 1
          %s1363 = scalar_lea.sflag [#allocation3], %s1362
          %s1364 = sand.u32 %s204, 1
          %s1365 = smul.addr %s1364, 8
          %s1366 = scalar_lea.vmem [#allocation2], %s1365
          %1367 = dma.done %s1363, 128
        $region64: #{tpu_custom_call.1} parent=59 // pred_fallthru
          _
      $region60: #{tpu_custom_call.1} parent=5 // pred_fallthru
        _
    $region6: #{tpu_custom_call.1} parent=1 // loop_footer
      %s21 = sadd.s32 1, %s17
    $region7: #{tpu_custom_call.1} parent=1 // loop_footer_branch
      %16 = sbr.rel target = $region3
    $region8: #{tpu_custom_call.1} parent=1 // loop_exit
      _
    %1368 = vsyncpa [#allocation3], 1
    %s1369 = scalar_lea.sflag [#allocation3], 1
    %1370 = vsyncpa %s1369, 1

</llo_original>
